<compile_context>
chip_gen: v7x
topology: tpu7x:2x2x1
jax: 0.10.0
libtpu: 0.0.40
codegen_flags: <defaults>
</compile_context>

<pallas_src>
import math
import functools

import jax
import jax.numpy as jnp
from jax.experimental import pallas as pl
from jax.experimental.pallas import tpu as pltpu


def _mha_kernel(num_heads, C,     # static: head count, true (unpadded) channel count
                x_ref,            # (1, S, Cp)   f32   token slab for this batch element
                wqkv_ref,         # (Cp, 3*Cp)   bf16  fused conv+in-proj, pre-transposed, stacked
                bqkv_ref,         # (1, 3*Cp)    f32   fused biases
                wo_ref,           # (Cp, Cp)     bf16  out-proj weight, pre-transposed, padded
                bo_ref,           # (1, Cp)      f32
                gamma_ref,        # (1,)         f32   SMEM scalar
                out_ref,          # (1, S, Cp)   f32
                attn_scr):        # (S, Cp)      f32   VMEM scratch: concatenated head outputs
    _, S, Cp = x_ref.shape
    D = C // num_heads
    scale = 1.0 / math.sqrt(D)

    x = x_ref[0]                                         # (S, Cp) f32, kept for the residual
    x_bf = x.astype(jnp.bfloat16)

    # Single stacked, lane-dense projection: (S,Cp)@(Cp,3Cp) -> (S,3Cp), f32 accumulation.
    qkv = jnp.dot(x_bf, wqkv_ref[...],
                  preferred_element_type=jnp.float32) + bqkv_ref[...]
    qkv_bf = qkv.astype(jnp.bfloat16)                    # cast once; reused by all head slices

    # One K relayout per batch element (instead of one implicit transpose per head):
    # k_t rows are key channels, so each head's K^T is a clean (D, S) sublane slice.
    k_t = qkv[:, Cp:2 * Cp].T.astype(jnp.bfloat16)       # (Cp, S)

    # Zero the scratch so the padded channel columns (C..Cp) feeding the out-proj
    # are well-defined (stale VMEM could hold NaN/Inf).
    attn_scr[...] = jnp.zeros_like(attn_scr)

    for h in range(num_heads):                           # tiny static unroll (num_heads == 4)
        lo = h * D
        qh = qkv_bf[:, lo:lo + D]                        # (S, D)
        kh_t = k_t[lo:lo + D, :]                         # (D, S)  already transposed
        vh = qkv_bf[:, 2 * Cp + lo:2 * Cp + lo + D]      # (S, D)

        # scores with f32 accumulation, numerically-stable f32 softmax
        s = jnp.dot(qh, kh_t, preferred_element_type=jnp.float32) * scale   # (S, S)
        s = s - jnp.max(s, axis=-1, keepdims=True)
        p = jnp.exp(s)
        p = p * pl.reciprocal(jnp.sum(p, axis=-1, keepdims=True), approx=True)

        # drop the head output at its lane offset; out-projection happens once below
        attn_scr[:, lo:lo + D] = jnp.dot(p.astype(jnp.bfloat16), vh,
                                         preferred_element_type=jnp.float32)

    # Single (S,Cp)@(Cp,Cp) out-projection; padded rows of wo are zero so the pad
    # columns of the scratch contribute nothing.
    o = jnp.dot(attn_scr[...].astype(jnp.bfloat16), wo_ref[...],
                preferred_element_type=jnp.float32) + bo_ref[...]

    out_ref[0] = gamma_ref[0] * o + x


def multi_head_attention(x, params, num_heads):
    """x: (B, C, H, W) float32, NCHW like the PyTorch module."""
    (wq, bq, wk, bk, wv, bv,
     wiq, biq, wik, bik, wiv, biv,
     wo, bo, gamma) = params

    B, C, H, W = x.shape
    S = H * W
    assert C % num_heads == 0
    Cp = ((C + 127) // 128) * 128                        # pad channels to full lane width

    def pad2(m, rows, cols):
        return jnp.pad(m, ((0, rows - m.shape[0]), (0, cols - m.shape[1])))

    # ---- offline (wrapper-side, f32) weight fusion / pre-transposition / padding -------
    # conv1x1 then in-proj:  y = (x Wc^T + bc) Wi^T + bi  ==  x (Wi Wc)^T + (bc Wi^T + bi)
    w_eff_q, b_eff_q = (wiq @ wq).T, bq @ wiq.T + biq
    w_eff_k, b_eff_k = (wik @ wk).T, bk @ wik.T + bik
    w_eff_v, b_eff_v = (wiv @ wv).T, bv @ wiv.T + biv

    w_qkv = jnp.concatenate([pad2(w_eff_q, Cp, Cp),
                             pad2(w_eff_k, Cp, Cp),
                             pad2(w_eff_v, Cp, Cp)], axis=1).astype(jnp.bfloat16)  # (Cp, 3Cp)
    b_qkv = jnp.concatenate([pad2(b_eff_q, 1, Cp),
                             pad2(b_eff_k, 1, Cp),
                             pad2(b_eff_v, 1, Cp)], axis=1)                        # (1, 3Cp) f32
    wo_p = pad2(wo.T, Cp, Cp).astype(jnp.bfloat16)                                 # (Cp, Cp)
    bo_p = pad2(bo, 1, Cp)                                                         # (1, Cp)  f32
    gamma_s = gamma.reshape(1).astype(jnp.float32)                                 # SMEM scalar
    # -------------------------------------------------------------------------------------

    # Layout plumbing stays in the wrapper (XLA fuses pad+transpose); the kernel sees
    # ready-made lane-dense (S, Cp) token slabs and never reshapes.
    x_tok = jnp.transpose(x.reshape(B, C, S), (0, 2, 1))         # (B, S, C)
    x_tok = jnp.pad(x_tok, ((0, 0), (0, 0), (0, Cp - C)))        # (B, S, Cp)

    grid = (B,)                                                  # batch-parallel (v7x: 2 TCs)
    tok_sp   = pl.BlockSpec((1, S, Cp), lambda b: (b, 0, 0))
    wqkv_sp  = pl.BlockSpec((Cp, 3 * Cp), lambda b: (0, 0))
    bqkv_sp  = pl.BlockSpec((1, 3 * Cp), lambda b: (0, 0))
    wo_sp    = pl.BlockSpec((Cp, Cp), lambda b: (0, 0))
    bo_sp    = pl.BlockSpec((1, Cp), lambda b: (0, 0))
    gamma_sp = pl.BlockSpec(memory_space=pltpu.MemorySpace.SMEM)  # scalar path, no VMEM tile

    out_tok = pl.pallas_call(
        functools.partial(_mha_kernel, num_heads, C),
        out_shape=jax.ShapeDtypeStruct((B, S, Cp), jnp.float32),
        grid=grid,
        in_specs=[tok_sp, wqkv_sp, bqkv_sp, wo_sp, bo_sp, gamma_sp],
        out_specs=tok_sp,
        scratch_shapes=[pltpu.VMEM((S, Cp), jnp.float32)],
        compiler_params=pltpu.CompilerParams(dimension_semantics=("parallel",)),
    )(x_tok, w_qkv, b_qkv, wo_p, bo_p, gamma_s)

    out = out_tok[:, :, :C]                                      # drop padded channels
    return jnp.transpose(out, (0, 2, 1)).reshape(B, C, H, W)


def init_params(key, C, gamma_value=0.0):
    """Deterministic synthetic init with the same shapes as the PyTorch module."""
    ks = jax.random.split(key, 14)

    def lin(k, shape, fan_in):
        bound = 1.0 / math.sqrt(fan_in)
        return jax.random.uniform(k, shape, jnp.float32, -bound, bound)

    wq,  bq  = lin(ks[0],  (C, C), C), lin(ks[1],  (1, C), C)   # query 1x1 conv
    wk,  bk  = lin(ks[2],  (C, C), C), lin(ks[3],  (1, C), C)   # key   1x1 conv
    wv,  bv  = lin(ks[4],  (C, C), C), lin(ks[5],  (1, C), C)   # value 1x1 conv
    wiq, biq = lin(ks[6],  (C, C), C), lin(ks[7],  (1, C), C)   # in_proj_weight[:C]
    wik, bik = lin(ks[8],  (C, C), C), lin(ks[9],  (1, C), C)   # in_proj_weight[C:2C]
    wiv, biv = lin(ks[10], (C, C), C), lin(ks[11], (1, C), C)   # in_proj_weight[2C:]
    wo,  bo  = lin(ks[12], (C, C), C), lin(ks[13], (1, C), C)   # out_proj
    gamma = jnp.full((1, 1), gamma_value, jnp.float32)          # torch.zeros(1) by default
    return (wq, bq, wk, bk, wv, bv, wiq, biq, wik, bik, wiv, biv, wo, bo, gamma)


def reference(x, params, num_heads):
    """Pure-JAX f32 reference reproducing the PyTorch forward semantics (unfused)."""
    (wq, bq, wk, bk, wv, bv, wiq, biq, wik, bik, wiv, biv, wo, bo, gamma) = params
    B, C, H, W = x.shape
    S = H * W
    D = C // num_heads
    xf = jnp.transpose(x.reshape(B, C, S), (0, 2, 1))
    q = (xf @ wq.T + bq) @ wiq.T + biq
    k = (xf @ wk.T + bk) @ wik.T + bik
    v = (xf @ wv.T + bv) @ wiv.T + biv
    split = lambda t: t.reshape(B, S, num_heads, D).transpose(0, 2, 1, 3)
    qh, kh, vh = split(q), split(k), split(v)
    s = jnp.einsum('bhqd,bhkd->bhqk', qh, kh) / math.sqrt(D)
    p = jax.nn.softmax(s, axis=-1)
    o = jnp.einsum('bhqk,bhkd->bhqd', p, vh)
    o = o.transpose(0, 2, 1, 3).reshape(B, S, C)
    o = o @ wo.T + bo
    out = gamma[0, 0] * o + xf
    return jnp.transpose(out, (0, 2, 1)).reshape(B, C, H, W)


if __name__ == "__main__":
    B, C, H, W = 2, 32, 8, 8
    num_heads = 4

    key = jax.random.PRNGKey(0)
    kx, kp = jax.random.split(key)
    x = jax.random.normal(kx, (B, C, H, W), jnp.float32)

    # Module-faithful parameters (gamma == 0, as in torch.zeros(1)).
    params = init_params(kp, C, gamma_value=0.0)
    out = jax.block_until_ready(multi_head_attention(x, params, num_heads))
    assert jnp.allclose(out, reference(x, params, num_heads), atol=2e-2, rtol=2e-2)

    # Also exercise the full attention path with a non-zero gamma
    # (bf16 matmul operands -> compare against the f32 reference with loose tolerance).
    params_nz = init_params(kp, C, gamma_value=0.5)
    out_nz = jax.block_until_ready(multi_head_attention(x, params_nz, num_heads))
    assert jnp.allclose(out_nz, reference(x, params_nz, num_heads), atol=2e-2, rtol=2e-2)

    print("KERNEL_OK")
</pallas_src>

<mosaic_0001>
module attributes {stable_mosaic.version = 11 : i64} {
  func.func @_mha_kernel(%arg0: i32, %arg1: memref<1x64x128xf32, #tpu.memory_space<vmem>>, %arg2: memref<128x384xbf16, #tpu.memory_space<vmem>>, %arg3: memref<1x384xf32, #tpu.memory_space<vmem>>, %arg4: memref<128x128xbf16, #tpu.memory_space<vmem>>, %arg5: memref<1x128xf32, #tpu.memory_space<vmem>>, %arg6: memref<1xf32, #tpu.memory_space<smem>>, %arg7: memref<1x64x128xf32, #tpu.memory_space<vmem>>, %arg8: memref<64x128xf32, #tpu.memory_space<vmem>>) attributes {dimension_semantics = [#tpu.dimension_semantics<parallel>], iteration_bounds = array<i64: 2>, scalar_prefetch = 0 : i64, scratch_operands = 1 : i64, tpu.core_type = #tpu.core_type<tc>, window_params = [{transform_indices = @transform_0, window_bounds = array<i64: 1, 64, 128>}, {pipeline_mode = #tpu.pipeline_mode<synchronous>, transform_indices = @transform_1, window_bounds = array<i64: 128, 384>}, {pipeline_mode = #tpu.pipeline_mode<synchronous>, transform_indices = @transform_2, window_bounds = array<i64: 1, 384>}, {pipeline_mode = #tpu.pipeline_mode<synchronous>, transform_indices = @transform_3, window_bounds = array<i64: 128, 128>}, {pipeline_mode = #tpu.pipeline_mode<synchronous>, transform_indices = @transform_4, window_bounds = array<i64: 1, 128>}, {transform_indices = @transform_5, window_bounds = array<i64: 1>}, {transform_indices = @transform_6, window_bounds = array<i64: 1, 64, 128>}]} {
    %c0 = arith.constant 0 : index
    %c0_0 = arith.constant 0 : index
    %c0_1 = arith.constant 0 : index
    %0 = vector.load %arg1[%c0, %c0_0, %c0_1] : memref<1x64x128xf32, #tpu.memory_space<vmem>>, vector<1x64x128xf32>
    %1 = vector.shape_cast %0 : vector<1x64x128xf32> to vector<64x128xf32>
    %2 = arith.truncf %1 : vector<64x128xf32> to vector<64x128xbf16>
    %c0_2 = arith.constant 0 : index
    %c0_3 = arith.constant 0 : index
    %3 = vector.load %arg2[%c0_2, %c0_3] : memref<128x384xbf16, #tpu.memory_space<vmem>>, vector<128x384xbf16>
    %cst = arith.constant dense<0.000000e+00> : vector<64x384xf32>
    %4 = tpu.matmul %2, %3, %cst {dimension_numbers = #tpu.dot_dimension_numbers<[1], [0], [0], [1], [0, 0, 1, 1], [], []>} : vector<64x128xbf16>, vector<128x384xbf16>, vector<64x384xf32> -> vector<64x384xf32>
    %c0_4 = arith.constant 0 : index
    %c0_5 = arith.constant 0 : index
    %5 = vector.load %arg3[%c0_4, %c0_5] : memref<1x384xf32, #tpu.memory_space<vmem>>, vector<1x384xf32>
    %6 = vector.broadcast %5 : vector<1x384xf32> to vector<64x384xf32>
    %7 = arith.addf %4, %6 : vector<64x384xf32>
    %8 = arith.truncf %7 : vector<64x384xf32> to vector<64x384xbf16>
    %9 = vector.extract_strided_slice %7 {offsets = [0, 128], sizes = [64, 128], strides = [1, 1]} : vector<64x384xf32> to vector<64x128xf32>
    %10 = tpu.transpose %9, [1, 0] : vector<64x128xf32> -> vector<128x64xf32>
    %11 = arith.truncf %10 : vector<128x64xf32> to vector<128x64xbf16>
    %cst_6 = arith.constant 0.000000e+00 : f32
    %12 = vector.broadcast %cst_6 : f32 to vector<64x128xf32>
    %c0_7 = arith.constant 0 : index
    %c0_8 = arith.constant 0 : index
    %13 = vector.load %arg8[%c0_7, %c0_8] : memref<64x128xf32, #tpu.memory_space<vmem>>, vector<64x128xf32>
    tpu.vector_store %arg8[%c0_7, %c0_8], %12 {strides = array<i32>} : memref<64x128xf32, #tpu.memory_space<vmem>>, vector<64x128xf32>,
    %14 = vector.extract_strided_slice %8 {offsets = [0, 0], sizes = [64, 8], strides = [1, 1]} : vector<64x384xbf16> to vector<64x8xbf16>
    %15 = vector.extract_strided_slice %11 {offsets = [0, 0], sizes = [8, 64], strides = [1, 1]} : vector<128x64xbf16> to vector<8x64xbf16>
    %16 = vector.extract_strided_slice %8 {offsets = [0, 256], sizes = [64, 8], strides = [1, 1]} : vector<64x384xbf16> to vector<64x8xbf16>
    %cst_9 = arith.constant dense<0.000000e+00> : vector<64x64xf32>
    %17 = tpu.matmul %14, %15, %cst_9 {dimension_numbers = #tpu.dot_dimension_numbers<[1], [0], [0], [1], [0, 0, 1, 1], [], []>} : vector<64x8xbf16>, vector<8x64xbf16>, vector<64x64xf32> -> vector<64x64xf32>
    %cst_10 = arith.constant 0.353553385 : f32
    %18 = vector.broadcast %cst_10 : f32 to vector<64x64xf32>
    %19 = arith.mulf %17, %18 : vector<64x64xf32>
    %cst_11 = arith.constant dense<0xFF800000> : vector<64xf32>
    %20 = vector.multi_reduction <maximumf>, %19, %cst_11 [1] : vector<64x64xf32> to vector<64xf32>
    %21 = vector.shape_cast %20 : vector<64xf32> to vector<64x1xf32>
    %22 = vector.broadcast %21 : vector<64x1xf32> to vector<64x64xf32>
    %23 = arith.subf %19, %22 : vector<64x64xf32>
    %24 = math.exp %23 : vector<64x64xf32>
    %cst_12 = arith.constant dense<0.000000e+00> : vector<64xf32>
    %25 = vector.multi_reduction <add>, %24, %cst_12 [1] : vector<64x64xf32> to vector<64xf32>
    %26 = vector.shape_cast %25 : vector<64xf32> to vector<64x1xf32>
    %27 = tpu.reciprocal %26 {approx = true} : vector<64x1xf32> -> vector<64x1xf32>
    %28 = vector.broadcast %27 : vector<64x1xf32> to vector<64x64xf32>
    %29 = arith.mulf %24, %28 : vector<64x64xf32>
    %30 = arith.truncf %29 : vector<64x64xf32> to vector<64x64xbf16>
    %cst_13 = arith.constant dense<0.000000e+00> : vector<64x8xf32>
    %31 = tpu.matmul %30, %16, %cst_13 {dimension_numbers = #tpu.dot_dimension_numbers<[1], [0], [0], [1], [0, 0, 1, 1], [], []>} : vector<64x64xbf16>, vector<64x8xbf16>, vector<64x8xf32> -> vector<64x8xf32>
    %c0_14 = arith.constant 0 : index
    %c0_15 = arith.constant 0 : index
    %32 = vector.load %arg8[%c0_14, %c0_15] : memref<64x128xf32, #tpu.memory_space<vmem>>, vector<64x8xf32>
    tpu.vector_store %arg8[%c0_14, %c0_15], %31 {strides = array<i32>} : memref<64x128xf32, #tpu.memory_space<vmem>>, vector<64x8xf32>,
    %33 = vector.extract_strided_slice %8 {offsets = [0, 8], sizes = [64, 8], strides = [1, 1]} : vector<64x384xbf16> to vector<64x8xbf16>
    %34 = vector.extract_strided_slice %11 {offsets = [8, 0], sizes = [8, 64], strides = [1, 1]} : vector<128x64xbf16> to vector<8x64xbf16>
    %35 = vector.extract_strided_slice %8 {offsets = [0, 264], sizes = [64, 8], strides = [1, 1]} : vector<64x384xbf16> to vector<64x8xbf16>
    %cst_16 = arith.constant dense<0.000000e+00> : vector<64x64xf32>
    %36 = tpu.matmul %33, %34, %cst_16 {dimension_numbers = #tpu.dot_dimension_numbers<[1], [0], [0], [1], [0, 0, 1, 1], [], []>} : vector<64x8xbf16>, vector<8x64xbf16>, vector<64x64xf32> -> vector<64x64xf32>
    %cst_17 = arith.constant 0.353553385 : f32
    %37 = vector.broadcast %cst_17 : f32 to vector<64x64xf32>
    %38 = arith.mulf %36, %37 : vector<64x64xf32>
    %cst_18 = arith.constant dense<0xFF800000> : vector<64xf32>
    %39 = vector.multi_reduction <maximumf>, %38, %cst_18 [1] : vector<64x64xf32> to vector<64xf32>
    %40 = vector.shape_cast %39 : vector<64xf32> to vector<64x1xf32>
    %41 = vector.broadcast %40 : vector<64x1xf32> to vector<64x64xf32>
    %42 = arith.subf %38, %41 : vector<64x64xf32>
    %43 = math.exp %42 : vector<64x64xf32>
    %cst_19 = arith.constant dense<0.000000e+00> : vector<64xf32>
    %44 = vector.multi_reduction <add>, %43, %cst_19 [1] : vector<64x64xf32> to vector<64xf32>
    %45 = vector.shape_cast %44 : vector<64xf32> to vector<64x1xf32>
    %46 = tpu.reciprocal %45 {approx = true} : vector<64x1xf32> -> vector<64x1xf32>
    %47 = vector.broadcast %46 : vector<64x1xf32> to vector<64x64xf32>
    %48 = arith.mulf %43, %47 : vector<64x64xf32>
    %49 = arith.truncf %48 : vector<64x64xf32> to vector<64x64xbf16>
    %cst_20 = arith.constant dense<0.000000e+00> : vector<64x8xf32>
    %50 = tpu.matmul %49, %35, %cst_20 {dimension_numbers = #tpu.dot_dimension_numbers<[1], [0], [0], [1], [0, 0, 1, 1], [], []>} : vector<64x64xbf16>, vector<64x8xbf16>, vector<64x8xf32> -> vector<64x8xf32>
    %c0_21 = arith.constant 0 : index
    %c8 = arith.constant 8 : index
    %51 = vector.load %arg8[%c0_21, %c8] : memref<64x128xf32, #tpu.memory_space<vmem>>, vector<64x8xf32>
    tpu.vector_store %arg8[%c0_21, %c8], %50 {strides = array<i32>} : memref<64x128xf32, #tpu.memory_space<vmem>>, vector<64x8xf32>,
    %52 = vector.extract_strided_slice %8 {offsets = [0, 16], sizes = [64, 8], strides = [1, 1]} : vector<64x384xbf16> to vector<64x8xbf16>
    %53 = vector.extract_strided_slice %11 {offsets = [16, 0], sizes = [8, 64], strides = [1, 1]} : vector<128x64xbf16> to vector<8x64xbf16>
    %54 = vector.extract_strided_slice %8 {offsets = [0, 272], sizes = [64, 8], strides = [1, 1]} : vector<64x384xbf16> to vector<64x8xbf16>
    %cst_22 = arith.constant dense<0.000000e+00> : vector<64x64xf32>
    %55 = tpu.matmul %52, %53, %cst_22 {dimension_numbers = #tpu.dot_dimension_numbers<[1], [0], [0], [1], [0, 0, 1, 1], [], []>} : vector<64x8xbf16>, vector<8x64xbf16>, vector<64x64xf32> -> vector<64x64xf32>
    %cst_23 = arith.constant 0.353553385 : f32
    %56 = vector.broadcast %cst_23 : f32 to vector<64x64xf32>
    %57 = arith.mulf %55, %56 : vector<64x64xf32>
    %cst_24 = arith.constant dense<0xFF800000> : vector<64xf32>
    %58 = vector.multi_reduction <maximumf>, %57, %cst_24 [1] : vector<64x64xf32> to vector<64xf32>
    %59 = vector.shape_cast %58 : vector<64xf32> to vector<64x1xf32>
    %60 = vector.broadcast %59 : vector<64x1xf32> to vector<64x64xf32>
    %61 = arith.subf %57, %60 : vector<64x64xf32>
    %62 = math.exp %61 : vector<64x64xf32>
    %cst_25 = arith.constant dense<0.000000e+00> : vector<64xf32>
    %63 = vector.multi_reduction <add>, %62, %cst_25 [1] : vector<64x64xf32> to vector<64xf32>
    %64 = vector.shape_cast %63 : vector<64xf32> to vector<64x1xf32>
    %65 = tpu.reciprocal %64 {approx = true} : vector<64x1xf32> -> vector<64x1xf32>
    %66 = vector.broadcast %65 : vector<64x1xf32> to vector<64x64xf32>
    %67 = arith.mulf %62, %66 : vector<64x64xf32>
    %68 = arith.truncf %67 : vector<64x64xf32> to vector<64x64xbf16>
    %cst_26 = arith.constant dense<0.000000e+00> : vector<64x8xf32>
    %69 = tpu.matmul %68, %54, %cst_26 {dimension_numbers = #tpu.dot_dimension_numbers<[1], [0], [0], [1], [0, 0, 1, 1], [], []>} : vector<64x64xbf16>, vector<64x8xbf16>, vector<64x8xf32> -> vector<64x8xf32>
    %c0_27 = arith.constant 0 : index
    %c16 = arith.constant 16 : index
    %70 = vector.load %arg8[%c0_27, %c16] : memref<64x128xf32, #tpu.memory_space<vmem>>, vector<64x8xf32>
    tpu.vector_store %arg8[%c0_27, %c16], %69 {strides = array<i32>} : memref<64x128xf32, #tpu.memory_space<vmem>>, vector<64x8xf32>,
    %71 = vector.extract_strided_slice %8 {offsets = [0, 24], sizes = [64, 8], strides = [1, 1]} : vector<64x384xbf16> to vector<64x8xbf16>
    %72 = vector.extract_strided_slice %11 {offsets = [24, 0], sizes = [8, 64], strides = [1, 1]} : vector<128x64xbf16> to vector<8x64xbf16>
    %73 = vector.extract_strided_slice %8 {offsets = [0, 280], sizes = [64, 8], strides = [1, 1]} : vector<64x384xbf16> to vector<64x8xbf16>
    %cst_28 = arith.constant dense<0.000000e+00> : vector<64x64xf32>
    %74 = tpu.matmul %71, %72, %cst_28 {dimension_numbers = #tpu.dot_dimension_numbers<[1], [0], [0], [1], [0, 0, 1, 1], [], []>} : vector<64x8xbf16>, vector<8x64xbf16>, vector<64x64xf32> -> vector<64x64xf32>
    %cst_29 = arith.constant 0.353553385 : f32
    %75 = vector.broadcast %cst_29 : f32 to vector<64x64xf32>
    %76 = arith.mulf %74, %75 : vector<64x64xf32>
    %cst_30 = arith.constant dense<0xFF800000> : vector<64xf32>
    %77 = vector.multi_reduction <maximumf>, %76, %cst_30 [1] : vector<64x64xf32> to vector<64xf32>
    %78 = vector.shape_cast %77 : vector<64xf32> to vector<64x1xf32>
    %79 = vector.broadcast %78 : vector<64x1xf32> to vector<64x64xf32>
    %80 = arith.subf %76, %79 : vector<64x64xf32>
    %81 = math.exp %80 : vector<64x64xf32>
    %cst_31 = arith.constant dense<0.000000e+00> : vector<64xf32>
    %82 = vector.multi_reduction <add>, %81, %cst_31 [1] : vector<64x64xf32> to vector<64xf32>
    %83 = vector.shape_cast %82 : vector<64xf32> to vector<64x1xf32>
    %84 = tpu.reciprocal %83 {approx = true} : vector<64x1xf32> -> vector<64x1xf32>
    %85 = vector.broadcast %84 : vector<64x1xf32> to vector<64x64xf32>
    %86 = arith.mulf %81, %85 : vector<64x64xf32>
    %87 = arith.truncf %86 : vector<64x64xf32> to vector<64x64xbf16>
    %cst_32 = arith.constant dense<0.000000e+00> : vector<64x8xf32>
    %88 = tpu.matmul %87, %73, %cst_32 {dimension_numbers = #tpu.dot_dimension_numbers<[1], [0], [0], [1], [0, 0, 1, 1], [], []>} : vector<64x64xbf16>, vector<64x8xbf16>, vector<64x8xf32> -> vector<64x8xf32>
    %c0_33 = arith.constant 0 : index
    %c24 = arith.constant 24 : index
    %89 = vector.load %arg8[%c0_33, %c24] : memref<64x128xf32, #tpu.memory_space<vmem>>, vector<64x8xf32>
    tpu.vector_store %arg8[%c0_33, %c24], %88 {strides = array<i32>} : memref<64x128xf32, #tpu.memory_space<vmem>>, vector<64x8xf32>,
    %c0_34 = arith.constant 0 : index
    %c0_35 = arith.constant 0 : index
    %90 = vector.load %arg8[%c0_34, %c0_35] : memref<64x128xf32, #tpu.memory_space<vmem>>, vector<64x128xf32>
    %91 = arith.truncf %90 : vector<64x128xf32> to vector<64x128xbf16>
    %c0_36 = arith.constant 0 : index
    %c0_37 = arith.constant 0 : index
    %92 = vector.load %arg4[%c0_36, %c0_37] : memref<128x128xbf16, #tpu.memory_space<vmem>>, vector<128x128xbf16>
    %cst_38 = arith.constant dense<0.000000e+00> : vector<64x128xf32>
    %93 = tpu.matmul %91, %92, %cst_38 {dimension_numbers = #tpu.dot_dimension_numbers<[1], [0], [0], [1], [0, 0, 1, 1], [], []>} : vector<64x128xbf16>, vector<128x128xbf16>, vector<64x128xf32> -> vector<64x128xf32>
    %c0_39 = arith.constant 0 : index
    %c0_40 = arith.constant 0 : index
    %94 = vector.load %arg5[%c0_39, %c0_40] : memref<1x128xf32, #tpu.memory_space<vmem>>, vector<1x128xf32>
    %95 = vector.broadcast %94 : vector<1x128xf32> to vector<64x128xf32>
    %96 = arith.addf %93, %95 : vector<64x128xf32>
    %c0_41 = arith.constant 0 : index
    %97 = memref.load %arg6[%c0_41] : memref<1xf32, #tpu.memory_space<smem>>
    %98 = vector.broadcast %97 : f32 to vector<64x128xf32>
    %99 = arith.mulf %98, %96 : vector<64x128xf32>
    %100 = arith.addf %99, %1 : vector<64x128xf32>
    %c0_42 = arith.constant 0 : index
    %c0_43 = arith.constant 0 : index
    %c0_44 = arith.constant 0 : index
    %101 = vector.load %arg7[%c0_42, %c0_43, %c0_44] : memref<1x64x128xf32, #tpu.memory_space<vmem>>, vector<1x64x128xf32>
    %102 = vector.shape_cast %101 : vector<1x64x128xf32> to vector<64x128xf32>
    %103 = vector.shape_cast %100 : vector<64x128xf32> to vector<1x64x128xf32>
    tpu.vector_store %arg7[%c0_42, %c0_43, %c0_44], %103 {strides = array<i32>} : memref<1x64x128xf32, #tpu.memory_space<vmem>>, vector<1x64x128xf32>,
    return
  }
  func.func @transform_0(%arg0: i32) -> (i32, i32, i32) {
    %c0_i32 = arith.constant 0 : i32
    %c0_i32_0 = arith.constant 0 : i32
    %c0_i32_1 = arith.constant 0 : i32
    return %arg0, %c0_i32, %c0_i32_0 : i32, i32, i32
  }
  func.func @transform_1(%arg0: i32) -> (i32, i32) {
    %c0_i32 = arith.constant 0 : i32
    %c0_i32_0 = arith.constant 0 : i32
    %c0_i32_1 = arith.constant 0 : i32
    return %c0_i32, %c0_i32_0 : i32, i32
  }
  func.func @transform_2(%arg0: i32) -> (i32, i32) {
    %c0_i32 = arith.constant 0 : i32
    %c0_i32_0 = arith.constant 0 : i32
    %c0_i32_1 = arith.constant 0 : i32
    return %c0_i32, %c0_i32_0 : i32, i32
  }
  func.func @transform_3(%arg0: i32) -> (i32, i32) {
    %c0_i32 = arith.constant 0 : i32
    %c0_i32_0 = arith.constant 0 : i32
    %c0_i32_1 = arith.constant 0 : i32
    return %c0_i32, %c0_i32_0 : i32, i32
  }
  func.func @transform_4(%arg0: i32) -> (i32, i32) {
    %c0_i32 = arith.constant 0 : i32
    %c0_i32_0 = arith.constant 0 : i32
    %c0_i32_1 = arith.constant 0 : i32
    return %c0_i32, %c0_i32_0 : i32, i32
  }
  func.func @transform_5(%arg0: i32) -> i32 {
    %c0_i32 = arith.constant 0 : i32
    %c0_i32_0 = arith.constant 0 : i32
    return %c0_i32 : i32
  }
  func.func @transform_6(%arg0: i32) -> (i32, i32, i32) {
    %c0_i32 = arith.constant 0 : i32
    %c0_i32_0 = arith.constant 0 : i32
    %c0_i32_1 = arith.constant 0 : i32
    return %arg0, %c0_i32, %c0_i32_0 : i32, i32, i32
  }
}

</mosaic_0001>

<llo_original>
// kernel: tpu_custom_call.1
$region0: #{tpu_custom_call.1}
  #allocation0 [shape = 'u32[]', space=smem, size = 0x4, offset = 0x4, fixed_abs, tag = 'smem constant byte address 0x4 - core index']
  #allocation1 [shape = 'u32[144,128]{1,0:T(1,128)}', space=vmem, size = 0x12000, scoped, tag = 'internal scratch']
  #allocation2 [shape = 'f32[64,128]{1,0:T(8,128)}', space=vmem, size = 0x8000, scoped, tag = 'scratch operand']
  #allocation3 [shape = 'f32[1]{0:T(128)S(6)}', space=smem, size = 0x200, scoped, tag = 'scoped memory for tpu_custom_call.1']
  %s0 = inlined_call_operand.hbm [shape: f32[2,64,128], index: 0, kind: input, shape index: {}]
  %s1 = inlined_call_operand.hbm [shape: bf16[128,384], index: 1, kind: input, shape index: {}]
  %s2 = inlined_call_operand.vmem [shape: f32[1,384], index: 2, kind: input, shape index: {}]
  %s3 = inlined_call_operand.hbm [shape: bf16[128,128], index: 3, kind: input, shape index: {}]
  %s4 = inlined_call_operand.vmem [shape: f32[1,128], index: 4, kind: input, shape index: {}]
  %s5 = inlined_call_operand.<no memory space> [shape: f32[1], index: 5, kind: input, shape index: {}]
  %s6 = inlined_call_operand.hbm [shape: f32[2,64,128], index: 6, kind: output, shape index: {}]
  %s7 = sld [smem:[#allocation0]]
  $region69: #{tpu_custom_call.1} parent=0
    _
  %s9 = ssub.s32 1, %s7
  %s10 = scalar_select 0, %s9, %s7
  %11 = sst [smem:[#allocation3]] %s5
  $region1: #{tpu_custom_call.1} parent=0
    #allocation4 [shape = 'u8[65536]{0}', space=vmem, size = 0x10000, scoped, tag = 'input window, operand 0']
    #allocation5 [shape = 's32[2]{0}', space=sflag, size = 0x8, scoped, tag = 'scoped memory for tpu_custom_call.1']
    #allocation6 [shape = 's32[2]{0}', space=sflag, size = 0x8, scoped, tag = 'scoped memory for tpu_custom_call.1']
    #allocation7 [shape = 'u8[98304]{0}', space=vmem, size = 0x18000, scoped, tag = 'input window, operand 1, single buffered']
    #allocation8 [shape = 's32[1]{0}', space=sflag, size = 0x4, scoped, tag = 'scoped memory for tpu_custom_call.1']
    #allocation9 [shape = 'u8[32768]{0}', space=vmem, size = 0x8000, scoped, tag = 'input window, operand 3, single buffered']
    #allocation10 [shape = 'u8[65536]{0}', space=vmem, size = 0x10000, scoped, tag = 'output window, operand 0']
    %12 = vsyncpa [#allocation5], 0
    %s13 = scalar_lea.sflag [#allocation5], 1
    %14 = vsyncpa %s13, 0
    %15 = vsyncpa [#allocation8], 0
    %16 = vsyncpa [#allocation6], 0
    %s17 = scalar_lea.sflag [#allocation6], 1
    %18 = vsyncpa %s17, 0
    loop: start=0, step=1, limit=4
    $region2: #{tpu_custom_call.1} parent=1 // loop_pre_header
      _
    $region3: #{tpu_custom_call.1} parent=1 // loop_header
      %s20 = sphi 0, %s24
      %p21 = scmp.ge.s32.totalorder %s20, 4
      %s30 = sphi 0, %s32
      %s33 = sphi 0, %s30
      %s34 = sphi 0, %s33
      %s50 = sphi 0, %s34
      %s54 = sphi 0, %s54
      %s56 = sphi 0, %s54
      %s57 = sphi 0, %s56
      %s71 = sphi 0, %s57
      %s75 = sphi 0, %s75
      %s77 = sphi 0, %s75
      %s78 = sphi 0, %s77
      %s92 = sphi 0, %s78
      %s96 = sphi 0, %s96
      %s98 = sphi 0, %s96
      %s99 = sphi 0, %s98
      %s113 = sphi 0, %s99
      %s117 = sphi 0, %s117
      %s119 = sphi 0, %s117
      %s120 = sphi 0, %s119
      %s134 = sphi 0, %s120
      %s138 = sphi 0, %s138
      %s140 = sphi 0, %s138
      %s141 = sphi 0, %s140
      %s155 = sphi 0, %s141
      %s161 = sphi 0, %s163
      %s164 = sphi 0, %s161
      %s165 = sphi 0, %s164
      %s181 = sphi 0, %s165
    $region4: #{tpu_custom_call.1} parent=1 // loop_header_branch
      %23 = sbr.rel (%p21) target = $region8
    $region5: #{tpu_custom_call.1} parent=1 // loop_body
      %s25 = ssub.s32 %s20, 1
      %s26 = ssub.s32 %s20, 2
      %s27 = sadd.s32 %s20, 1
      %s28 = ssub.s32 %s20, %s27
      %p29 = scmp.eq.s32.totalorder %s28, 0
      %s31 = sadd.s32 %s30, 1
      %s32 = scalar_select %p29, %s30, %s31
      %p35 = pneg %p29
      %p36 = scmp.eq.s32.totalorder %s20, 1
      %p37 = por %p35, %p36
      %p38 = scmp.ne.s32.totalorder %s30, %s33
      %p39 = scmp.eq.s32.totalorder %s20, 0
      %p40 = por %p38, %p39
      %p41 = scmp.ne.s32.totalorder %s30, %s33
      %p42 = scmp.eq.s32.totalorder %s25, 1
      %p43 = por %p41, %p42
      %p44 = scmp.ne.s32.totalorder %s33, %s34
      %p45 = scmp.eq.s32.totalorder %s25, 0
      %p46 = por %p44, %p45
      %p47 = scmp.ne.s32.totalorder %s33, %s34
      %p48 = scmp.eq.s32.totalorder %s26, 1
      %p49 = por %p47, %p48
      %p51 = scmp.ne.s32.totalorder %s34, %s50
      %p52 = scmp.eq.s32.totalorder %s26, 0
      %p53 = por %p51, %p52
      %s55 = sadd.s32 %s54, 1
      %p58 = scmp.eq.s32.totalorder %s20, 1
      %p59 = scmp.ne.s32.totalorder %s54, %s56
      %p60 = scmp.eq.s32.totalorder %s20, 0
      %p61 = por %p59, %p60
      %p62 = scmp.ne.s32.totalorder %s54, %s56
      %p63 = scmp.eq.s32.totalorder %s25, 1
      %p64 = por %p62, %p63
      %p65 = scmp.ne.s32.totalorder %s56, %s57
      %p66 = scmp.eq.s32.totalorder %s25, 0
      %p67 = por %p65, %p66
      %p68 = scmp.ne.s32.totalorder %s56, %s57
      %p69 = scmp.eq.s32.totalorder %s26, 1
      %p70 = por %p68, %p69
      %p72 = scmp.ne.s32.totalorder %s57, %s71
      %p73 = scmp.eq.s32.totalorder %s26, 0
      %p74 = por %p72, %p73
      %s76 = sadd.s32 %s75, 1
      %p79 = scmp.eq.s32.totalorder %s20, 1
      %p80 = scmp.ne.s32.totalorder %s75, %s77
      %p81 = scmp.eq.s32.totalorder %s20, 0
      %p82 = por %p80, %p81
      %p83 = scmp.ne.s32.totalorder %s75, %s77
      %p84 = scmp.eq.s32.totalorder %s25, 1
      %p85 = por %p83, %p84
      %p86 = scmp.ne.s32.totalorder %s77, %s78
      %p87 = scmp.eq.s32.totalorder %s25, 0
      %p88 = por %p86, %p87
      %p89 = scmp.ne.s32.totalorder %s77, %s78
      %p90 = scmp.eq.s32.totalorder %s26, 1
      %p91 = por %p89, %p90
      %p93 = scmp.ne.s32.totalorder %s78, %s92
      %p94 = scmp.eq.s32.totalorder %s26, 0
      %p95 = por %p93, %p94
      %s97 = sadd.s32 %s96, 1
      %p100 = scmp.eq.s32.totalorder %s20, 1
      %p101 = scmp.ne.s32.totalorder %s96, %s98
      %p102 = scmp.eq.s32.totalorder %s20, 0
      %p103 = por %p101, %p102
      %p104 = scmp.ne.s32.totalorder %s96, %s98
      %p105 = scmp.eq.s32.totalorder %s25, 1
      %p106 = por %p104, %p105
      %p107 = scmp.ne.s32.totalorder %s98, %s99
      %p108 = scmp.eq.s32.totalorder %s25, 0
      %p109 = por %p107, %p108
      %p110 = scmp.ne.s32.totalorder %s98, %s99
      %p111 = scmp.eq.s32.totalorder %s26, 1
      %p112 = por %p110, %p111
      %p114 = scmp.ne.s32.totalorder %s99, %s113
      %p115 = scmp.eq.s32.totalorder %s26, 0
      %p116 = por %p114, %p115
      %s118 = sadd.s32 %s117, 1
      %p121 = scmp.eq.s32.totalorder %s20, 1
      %p122 = scmp.ne.s32.totalorder %s117, %s119
      %p123 = scmp.eq.s32.totalorder %s20, 0
      %p124 = por %p122, %p123
      %p125 = scmp.ne.s32.totalorder %s117, %s119
      %p126 = scmp.eq.s32.totalorder %s25, 1
      %p127 = por %p125, %p126
      %p128 = scmp.ne.s32.totalorder %s119, %s120
      %p129 = scmp.eq.s32.totalorder %s25, 0
      %p130 = por %p128, %p129
      %p131 = scmp.ne.s32.totalorder %s119, %s120
      %p132 = scmp.eq.s32.totalorder %s26, 1
      %p133 = por %p131, %p132
      %p135 = scmp.ne.s32.totalorder %s120, %s134
      %p136 = scmp.eq.s32.totalorder %s26, 0
      %p137 = por %p135, %p136
      %s139 = sadd.s32 %s138, 1
      %p142 = scmp.eq.s32.totalorder %s20, 1
      %p143 = scmp.ne.s32.totalorder %s138, %s140
      %p144 = scmp.eq.s32.totalorder %s20, 0
      %p145 = por %p143, %p144
      %p146 = scmp.ne.s32.totalorder %s138, %s140
      %p147 = scmp.eq.s32.totalorder %s25, 1
      %p148 = por %p146, %p147
      %p149 = scmp.ne.s32.totalorder %s140, %s141
      %p150 = scmp.eq.s32.totalorder %s25, 0
      %p151 = por %p149, %p150
      %p152 = scmp.ne.s32.totalorder %s140, %s141
      %p153 = scmp.eq.s32.totalorder %s26, 1
      %p154 = por %p152, %p153
      %p156 = scmp.ne.s32.totalorder %s141, %s155
      %p157 = scmp.eq.s32.totalorder %s26, 0
      %p158 = por %p156, %p157
      %s159 = ssub.s32 %s20, %s27
      %p160 = scmp.eq.s32.totalorder %s159, 0
      %s162 = sadd.s32 %s161, 1
      %s163 = scalar_select %p160, %s161, %s162
      %p166 = pneg %p160
      %p167 = scmp.eq.s32.totalorder %s20, 1
      %p168 = por %p166, %p167
      %p169 = scmp.ne.s32.totalorder %s161, %s164
      %p170 = scmp.eq.s32.totalorder %s20, 0
      %p171 = por %p169, %p170
      %p172 = scmp.ne.s32.totalorder %s161, %s164
      %p173 = scmp.eq.s32.totalorder %s25, 1
      %p174 = por %p172, %p173
      %p175 = scmp.ne.s32.totalorder %s164, %s165
      %p176 = scmp.eq.s32.totalorder %s25, 0
      %p177 = por %p175, %p176
      %p178 = scmp.ne.s32.totalorder %s164, %s165
      %p179 = scmp.eq.s32.totalorder %s26, 1
      %p180 = por %p178, %p179
      %p182 = scmp.ne.s32.totalorder %s165, %s181
      %p183 = scmp.eq.s32.totalorder %s26, 0
      %p184 = por %p182, %p183
      %p185 = scmp.le.s32.totalorder 1, %s20
      %p186 = scmp.lt.s32.totalorder %s20, 3
      %p187 = pnand %p185, %p186
      %p188 = pneg %p187
      // Predicated region
      $region9: #{tpu_custom_call.1} parent=5 // pred_check
        _
      $region10: #{tpu_custom_call.1} parent=5 // pred_check_branch
        %190 = sbr.rel (%p187) target = $region12
      $region11: #{tpu_custom_call.1} parent=5 // pred_region
        %s191 = ssub.s32 %s20, 1
        // Predicated region
        $region13: #{tpu_custom_call.1} parent=11 // pred_check
          %p192 = pneg %p67
        $region14: #{tpu_custom_call.1} parent=11 // pred_check_branch
          %194 = sbr.rel (%p192) target = $region16
        $region15: #{tpu_custom_call.1} parent=11 // pred_region
          %s196 = ssub.s32 3072, 3072
          %197 = vsyncadd [#allocation8], %s196
          %s198 = sshll.u32 [#allocation7], 4
          %s199 = int_to_ptr.vmem [resolvable:$true] %s198
          %204 = dma.hbm_to_vmem [thread:$0]  %s1, 3072, %s199, [#allocation8], 192, 192, 12
        $region16: #{tpu_custom_call.1} parent=11 // pred_fallthru
          _
        // Predicated region
        $region17: #{tpu_custom_call.1} parent=11 // pred_check
          %p205 = pneg %p88
        $region18: #{tpu_custom_call.1} parent=11 // pred_check_branch
          %207 = sbr.rel (%p205) target = $region20
        $region19: #{tpu_custom_call.1} parent=11 // pred_region
          _
        $region20: #{tpu_custom_call.1} parent=11 // pred_fallthru
          _
        // Predicated region
        $region21: #{tpu_custom_call.1} parent=11 // pred_check
          %p208 = pneg %p109
        $region22: #{tpu_custom_call.1} parent=11 // pred_check_branch
          %210 = sbr.rel (%p208) target = $region24
        $region23: #{tpu_custom_call.1} parent=11 // pred_region
          %s212 = ssub.s32 1024, 1024
          %213 = vsyncadd [#allocation8], %s212
          %s214 = sshll.u32 [#allocation9], 4
          %s215 = int_to_ptr.vmem [resolvable:$true] %s214
          %220 = dma.hbm_to_vmem [thread:$0]  %s3, 1024, %s215, [#allocation8], 64, 64, 4
        $region24: #{tpu_custom_call.1} parent=11 // pred_fallthru
          _
        // Predicated region
        $region25: #{tpu_custom_call.1} parent=11 // pred_check
          %p221 = pneg %p130
        $region26: #{tpu_custom_call.1} parent=11 // pred_check_branch
          %223 = sbr.rel (%p221) target = $region28
        $region27: #{tpu_custom_call.1} parent=11 // pred_region
          _
        $region28: #{tpu_custom_call.1} parent=11 // pred_fallthru
          _
        // Predicated region
        $region29: #{tpu_custom_call.1} parent=11 // pred_check
          %p224 = pneg %p151
        $region30: #{tpu_custom_call.1} parent=11 // pred_check_branch
          %226 = sbr.rel (%p224) target = $region32
        $region31: #{tpu_custom_call.1} parent=11 // pred_region
          _
        $region32: #{tpu_custom_call.1} parent=11 // pred_fallthru
          _
      $region12: #{tpu_custom_call.1} parent=5 // pred_fallthru
        _
      %p227 = scmp.lt.s32.totalorder %s20, 2
      // Predicated region
      $region33: #{tpu_custom_call.1} parent=5 // pred_check
        %p228 = pneg %p227
      $region34: #{tpu_custom_call.1} parent=5 // pred_check_branch
        %230 = sbr.rel (%p228) target = $region36
      $region35: #{tpu_custom_call.1} parent=5 // pred_region
        // Predicated region
        $region37: #{tpu_custom_call.1} parent=35 // pred_check
          %p231 = pneg %p40
        $region38: #{tpu_custom_call.1} parent=35 // pred_check_branch
          %233 = sbr.rel (%p231) target = $region40
        $region39: #{tpu_custom_call.1} parent=35 // pred_region
          %s234 = sand.u32 %s30, 1
          %s235 = scalar_lea.sflag [#allocation5], %s234
          %s236 = sand.u32 %s30, 1
          %s237 = smul.addr %s236, 64
          %s238 = scalar_lea.vmem [#allocation4], %s237
          %s240 = ssub.s32 1024, 1024
          %241 = vsyncadd %s235, %s240
          %s242 = smul.addr %s20, 8
          %s243 = smul.addr %s242, 128
          %s244 = scalar_lea.hbm %s0, %s243
          %s245 = sshll.u32 %s238, 4
          %s246 = int_to_ptr.vmem [resolvable:$true] %s245
          %251 = dma.hbm_to_vmem [thread:$0]  %s244, 1024, %s246, %s235, 128, 128, 8
        $region40: #{tpu_custom_call.1} parent=35 // pred_fallthru
          _
      $region36: #{tpu_custom_call.1} parent=5 // pred_fallthru
        _
      %p252 = scmp.le.s32.totalorder 1, %s20
      %p253 = scmp.lt.s32.totalorder %s20, 3
      %p254 = pnand %p252, %p253
      %p255 = pneg %p254
      // Predicated region
      $region41: #{tpu_custom_call.1} parent=5 // pred_check
        _
      $region42: #{tpu_custom_call.1} parent=5 // pred_check_branch
        %257 = sbr.rel (%p254) target = $region44
      $region43: #{tpu_custom_call.1} parent=5 // pred_region
        %s258 = ssub.s32 %s20, 1
        %s259 = sand.u32 %s33, 1
        %s260 = scalar_lea.sflag [#allocation5], %s259
        %s261 = sand.u32 %s33, 1
        %s262 = smul.addr %s261, 64
        %s263 = scalar_lea.vmem [#allocation4], %s262
        // Predicated region
        $region45: #{tpu_custom_call.1} parent=43 // pred_check
          %p264 = pneg %p46
        $region46: #{tpu_custom_call.1} parent=43 // pred_check_branch
          %266 = sbr.rel (%p264) target = $region48
        $region47: #{tpu_custom_call.1} parent=43 // pred_region
          %267 = dma.done %s260, 1024
        $region48: #{tpu_custom_call.1} parent=43 // pred_fallthru
          _
        // Predicated region
        $region49: #{tpu_custom_call.1} parent=43 // pred_check
          %p268 = pneg %p67
        $region50: #{tpu_custom_call.1} parent=43 // pred_check_branch
          %270 = sbr.rel (%p268) target = $region52
        $region51: #{tpu_custom_call.1} parent=43 // pred_region
          %271 = dma.done [#allocation8], 3072
        $region52: #{tpu_custom_call.1} parent=43 // pred_fallthru
          _
        // Predicated region
        $region53: #{tpu_custom_call.1} parent=43 // pred_check
          %p272 = pneg %p109
        $region54: #{tpu_custom_call.1} parent=43 // pred_check_branch
          %274 = sbr.rel (%p272) target = $region56
        $region55: #{tpu_custom_call.1} parent=43 // pred_region
          %275 = dma.done [#allocation8], 1024
        $region56: #{tpu_custom_call.1} parent=43 // pred_fallthru
          _
        %s276 = sand.u32 %s33, 1
        %s277 = scalar_lea.sflag [#allocation5], %s276
        %s278 = sand.u32 %s33, 1
        %s279 = smul.addr %s278, 64
        %s280 = scalar_lea.vmem [#allocation4], %s279
        %p281 = pneg %p46
        %p282 = pneg %p43
        %p283 = pneg %p67
        %p284 = pneg %p64
        %p285 = pneg %p88
        %p286 = pneg %p85
        %p287 = pneg %p109
        %p288 = pneg %p106
        %p289 = pneg %p130
        %p290 = pneg %p127
        %p291 = pneg %p151
        %p292 = pneg %p148
        %p293 = pneg %p177
        %p294 = pneg %p174
        %s295 = sand.u32 %s164, 1
        %s296 = scalar_lea.sflag [#allocation6], %s295
        %s297 = sand.u32 %s164, 1
        %s298 = smul.addr %s297, 64
        %s299 = scalar_lea.vmem [#allocation10], %s298
        %v301 = vld [vmem:[%s263] sm:$0xff]
        %v302 = vld [vmem:[%s263 + $0x8] sm:$0xff]
        %v303 = vld [vmem:[%s263 + $0x10] sm:$0xff]
        %v304 = vld [vmem:[%s263 + $0x18] sm:$0xff]
        %v305 = vld [vmem:[%s263 + $0x20] sm:$0xff]
        %v306 = vld [vmem:[%s263 + $0x28] sm:$0xff]
        %v307 = vld [vmem:[%s263 + $0x30] sm:$0xff]
        %v308 = vld [vmem:[%s263 + $0x38] sm:$0xff]
        %v309 = vpack.c.bf16 %v302, %v301
        %v310 = vpack.c.bf16 %v304, %v303
        %v311 = vpack.c.bf16 %v306, %v305
        %v312 = vpack.c.bf16 %v308, %v307
        %v313 = vld [vmem:[#allocation7] sm:$0xff]
        %v314 = vld [vmem:[#allocation7 + $0x8] sm:$0xf]
        %v315 = vld [vmem:[#allocation7 + $0xc] sm:$0xff]
        %v316 = vld [vmem:[#allocation7 + $0x14] sm:$0xf]
        %v317 = vld [vmem:[#allocation7 + $0x18] sm:$0xff]
        %v318 = vld [vmem:[#allocation7 + $0x20] sm:$0xf]
        %v319 = vld [vmem:[#allocation7 + $0x24] sm:$0xff]
        %v320 = vld [vmem:[#allocation7 + $0x2c] sm:$0xf]
        %v321 = vld [vmem:[#allocation7 + $0x30] sm:$0xff]
        %v322 = vld [vmem:[#allocation7 + $0x38] sm:$0xf]
        %v323 = vld [vmem:[#allocation7 + $0x3c] sm:$0xff]
        %v324 = vld [vmem:[#allocation7 + $0x44] sm:$0xf]
        %v325 = vld [vmem:[#allocation7 + $0x48] sm:$0xff]
        %v326 = vld [vmem:[#allocation7 + $0x50] sm:$0xf]
        %v327 = vld [vmem:[#allocation7 + $0x54] sm:$0xff]
        %v328 = vld [vmem:[#allocation7 + $0x5c] sm:$0xf]
        %v329 = vld [vmem:[#allocation7 + $0x60] sm:$0xff]
        %v330 = vld [vmem:[#allocation7 + $0x68] sm:$0xf]
        %v331 = vld [vmem:[#allocation7 + $0x6c] sm:$0xff]
        %v332 = vld [vmem:[#allocation7 + $0x74] sm:$0xf]
        %v333 = vld [vmem:[#allocation7 + $0x78] sm:$0xff]
        %v334 = vld [vmem:[#allocation7 + $0x80] sm:$0xf]
        %v335 = vld [vmem:[#allocation7 + $0x84] sm:$0xff]
        %v336 = vld [vmem:[#allocation7 + $0x8c] sm:$0xf]
        %v337 = vld [vmem:[#allocation7 + $0x90] sm:$0xff]
        %v338 = vld [vmem:[#allocation7 + $0x98] sm:$0xf]
        %v339 = vld [vmem:[#allocation7 + $0x9c] sm:$0xff]
        %v340 = vld [vmem:[#allocation7 + $0xa4] sm:$0xf]
        %v341 = vld [vmem:[#allocation7 + $0xa8] sm:$0xff]
        %v342 = vld [vmem:[#allocation7 + $0xb0] sm:$0xf]
        %v343 = vld [vmem:[#allocation7 + $0xb4] sm:$0xff]
        %v344 = vld [vmem:[#allocation7 + $0xbc] sm:$0xf]
        %v345 = vld [vmem:[%s2] sm:$0x7]
        %v347 = vlaneseq
        %v348 = vshrl.u32 %v347, 7
        %v349 = vsub.s32 0, %v348
        %v350 = vrot.slane %v345, %v349
        %v351 = vlaneseq
        %v352 = vshrl.u32 %v351, 7
        %v353 = vsub.s32 1, %v352
        %v354 = vrot.slane %v345, %v353
        %v355 = vlaneseq
        %v356 = vshrl.u32 %v355, 7
        %v357 = vsub.s32 2, %v356
        %v358 = vrot.slane %v345, %v357
        %v394 = vunpack.c.l.b16 %v313
        %v395 = vunpack.c.h.b16 %v313
        %v396 = vunpack.c.l.b16 %v314
        %v397 = vunpack.c.l.b16 %v315
        %v398 = vunpack.c.h.b16 %v315
        %v399 = vunpack.c.l.b16 %v316
        %v400 = vunpack.c.l.b16 %v317
        %v401 = vunpack.c.h.b16 %v317
        %v402 = vunpack.c.l.b16 %v318
        %v403 = vunpack.c.l.b16 %v319
        %v404 = vunpack.c.h.b16 %v319
        %v405 = vunpack.c.l.b16 %v320
        %v406 = vunpack.c.l.b16 %v321
        %v407 = vunpack.c.h.b16 %v321
        %v408 = vunpack.c.l.b16 %v322
        %v409 = vunpack.c.l.b16 %v323
        %v410 = vunpack.c.h.b16 %v323
        %v411 = vunpack.c.l.b16 %v324
        %v412 = vunpack.c.l.b16 %v325
        %v413 = vunpack.c.h.b16 %v325
        %v414 = vunpack.c.l.b16 %v326
        %v415 = vunpack.c.l.b16 %v327
        %v416 = vunpack.c.h.b16 %v327
        %v417 = vunpack.c.l.b16 %v328
        %v418 = vunpack.c.l.b16 %v329
        %v419 = vunpack.c.h.b16 %v329
        %v420 = vunpack.c.l.b16 %v330
        %v421 = vunpack.c.l.b16 %v331
        %v422 = vunpack.c.h.b16 %v331
        %v423 = vunpack.c.l.b16 %v332
        %v424 = vunpack.c.l.b16 %v333
        %v425 = vunpack.c.h.b16 %v333
        %v426 = vunpack.c.l.b16 %v334
        %v427 = vunpack.c.l.b16 %v335
        %v428 = vunpack.c.h.b16 %v335
        %v429 = vunpack.c.l.b16 %v336
        %v430 = vunpack.c.l.b16 %v337
        %v431 = vunpack.c.h.b16 %v337
        %v432 = vunpack.c.l.b16 %v338
        %v433 = vunpack.c.l.b16 %v339
        %v434 = vunpack.c.h.b16 %v339
        %v435 = vunpack.c.l.b16 %v340
        %v436 = vunpack.c.l.b16 %v341
        %v437 = vunpack.c.h.b16 %v341
        %v438 = vunpack.c.l.b16 %v342
        %v439 = vunpack.c.l.b16 %v343
        %v440 = vunpack.c.h.b16 %v343
        %v441 = vunpack.c.l.b16 %v344
        %v442 = vpack.c.b16 %v397, %v394
        %v443 = vpack.c.b16 %v398, %v395
        %v444 = vpack.c.b16 %v399, %v396
        %v445 = vpack.c.b16 %v403, %v400
        %v446 = vpack.c.b16 %v404, %v401
        %v447 = vpack.c.b16 %v405, %v402
        %v448 = vpack.c.b16 %v409, %v406
        %v449 = vpack.c.b16 %v410, %v407
        %v450 = vpack.c.b16 %v411, %v408
        %v451 = vpack.c.b16 %v415, %v412
        %v452 = vpack.c.b16 %v416, %v413
        %v453 = vpack.c.b16 %v417, %v414
        %v454 = vpack.c.b16 %v421, %v418
        %v455 = vpack.c.b16 %v422, %v419
        %v456 = vpack.c.b16 %v423, %v420
        %v457 = vpack.c.b16 %v427, %v424
        %v458 = vpack.c.b16 %v428, %v425
        %v459 = vpack.c.b16 %v429, %v426
        %v460 = vpack.c.b16 %v433, %v430
        %v461 = vpack.c.b16 %v434, %v431
        %v462 = vpack.c.b16 %v435, %v432
        %v463 = vpack.c.b16 %v439, %v436
        %v464 = vpack.c.b16 %v440, %v437
        %v465 = vpack.c.b16 %v441, %v438
        %490 = vmatprep.subr.bf16.mxu0 %v443
        %491 = vmatpush1.bf16.msra.mxu0 %v442
        %492 = vmatprep.subr.bf16.mxu0 %v446
        %493 = vmatpush1.bf16.msra.mxu0 %v445
        %494 = vmatprep.subr.bf16.mxu0 %v449
        %495 = vmatpush1.bf16.msra.mxu0 %v448
        %496 = vmatprep.subr.bf16.mxu0 %v452
        %497 = vmatpush1.bf16.msra.mxu0 %v451
        %498 = vmatprep.subr.bf16.mxu0 %v455
        %499 = vmatpush1.bf16.msra.mxu0 %v454
        %500 = vmatprep.subr.bf16.mxu0 %v458
        %501 = vmatpush1.bf16.msra.mxu0 %v457
        %502 = vmatprep.subr.bf16.mxu0 %v461
        %503 = vmatpush1.bf16.msra.mxu0 %v460
        %504 = vmatprep.subr.bf16.mxu0 %v464
        %505 = vmatpush1.bf16.msra.mxu0 %v463
        %506 = vmatprep.subr.bf16.mxu0 0
        %507 = vmatpush1.bf16.msra.mxu0 0
        %508 = vmatprep.subr.bf16.mxu0 0
        %509 = vmatpush1.bf16.msra.mxu0 0
        %510 = vmatprep.subr.bf16.mxu0 0
        %511 = vmatpush1.bf16.msra.mxu0 0
        %512 = vmatprep.subr.bf16.mxu0 0
        %513 = vmatpush1.bf16.msra.mxu0 0
        %514 = vmatprep.subr.bf16.mxu0 0
        %515 = vmatpush1.bf16.msra.mxu0 0
        %516 = vmatprep.subr.bf16.mxu0 0
        %517 = vmatpush1.bf16.msra.mxu0 0
        %518 = vmatprep.subr.bf16.mxu0 0
        %519 = vmatpush1.bf16.msra.mxu0 0
        %520 = vmatprep.subr.bf16.mxu0 0
        %521 = vmatpush1.bf16.msra.mxu0 0
        %522 = vmatprep.mubr.bf16.mxu0 0
        %523 = vmatmul.mubr.bf16.gmra.mrb[0].mxu0 %v309
        %v524 = vpop.f32.mrb[0].mxu0
        %v525 = vadd.f32 %v350, %v524
        %v526 = vpop.f32.mrb[0].mxu0
        %v527 = vadd.f32 %v354, %v526
        %v528 = vpop.f32.mrb[0].mxu0
        %v529 = vadd.f32 %v350, %v528
        %v530 = vpop.f32.mrb[0].mxu0
        %v531 = vadd.f32 %v354, %v530
        %532 = vmatprep.mubr.bf16.mxu0 0
        %533 = vmatmul.mubr.bf16.gmra.mrb[0].mxu0 %v310
        %v534 = vpop.f32.mrb[0].mxu0
        %v535 = vadd.f32 %v350, %v534
        %v536 = vpop.f32.mrb[0].mxu0
        %v537 = vadd.f32 %v354, %v536
        %v538 = vpop.f32.mrb[0].mxu0
        %v539 = vadd.f32 %v350, %v538
        %v540 = vpop.f32.mrb[0].mxu0
        %v541 = vadd.f32 %v354, %v540
        %542 = vmatprep.mubr.bf16.mxu0 0
        %543 = vmatmul.mubr.bf16.gmra.mrb[0].mxu0 %v311
        %v544 = vpop.f32.mrb[0].mxu0
        %v545 = vadd.f32 %v350, %v544
        %v546 = vpop.f32.mrb[0].mxu0
        %v547 = vadd.f32 %v354, %v546
        %v548 = vpop.f32.mrb[0].mxu0
        %v549 = vadd.f32 %v350, %v548
        %v550 = vpop.f32.mrb[0].mxu0
        %v551 = vadd.f32 %v354, %v550
        %552 = vmatprep.mubr.bf16.mxu0 0
        %553 = vmatmul.mubr.bf16.gmra.mrb[0].mxu0 %v312
        %v554 = vpop.f32.mrb[0].mxu0
        %v555 = vadd.f32 %v350, %v554
        %v556 = vpop.f32.mrb[0].mxu0
        %v557 = vadd.f32 %v354, %v556
        %v558 = vpop.f32.mrb[0].mxu0
        %v559 = vadd.f32 %v350, %v558
        %v560 = vpop.f32.mrb[0].mxu0
        %v561 = vadd.f32 %v354, %v560
        %562 = vdwg.mxu0
        %563 = vmatprep.subr.bf16.mxu0 0
        %564 = vmatpush1.bf16.msra.mxu0 %v444
        %565 = vmatprep.subr.bf16.mxu0 0
        %566 = vmatpush1.bf16.msra.mxu0 %v447
        %567 = vmatprep.subr.bf16.mxu0 0
        %568 = vmatpush1.bf16.msra.mxu0 %v450
        %569 = vmatprep.subr.bf16.mxu0 0
        %570 = vmatpush1.bf16.msra.mxu0 %v453
        %571 = vmatprep.subr.bf16.mxu0 0
        %572 = vmatpush1.bf16.msra.mxu0 %v456
        %573 = vmatprep.subr.bf16.mxu0 0
        %574 = vmatpush1.bf16.msra.mxu0 %v459
        %575 = vmatprep.subr.bf16.mxu0 0
        %576 = vmatpush1.bf16.msra.mxu0 %v462
        %577 = vmatprep.subr.bf16.mxu0 0
        %578 = vmatpush1.bf16.msra.mxu0 %v465
        %579 = vmatprep.subr.bf16.mxu0 0
        %580 = vmatpush1.bf16.msra.mxu0 0
        %581 = vmatprep.subr.bf16.mxu0 0
        %582 = vmatpush1.bf16.msra.mxu0 0
        %583 = vmatprep.subr.bf16.mxu0 0
        %584 = vmatpush1.bf16.msra.mxu0 0
        %585 = vmatprep.subr.bf16.mxu0 0
        %586 = vmatpush1.bf16.msra.mxu0 0
        %587 = vmatprep.subr.bf16.mxu0 0
        %588 = vmatpush1.bf16.msra.mxu0 0
        %589 = vmatprep.subr.bf16.mxu0 0
        %590 = vmatpush1.bf16.msra.mxu0 0
        %591 = vmatprep.subr.bf16.mxu0 0
        %592 = vmatpush1.bf16.msra.mxu0 0
        %593 = vmatprep.subr.bf16.mxu0 0
        %594 = vmatpush1.bf16.msra.mxu0 0
        %595 = vmatprep.mubr.bf16.mxu0 0
        %596 = vmatmul.mubr.bf16.gmra.mrb[0].mxu0 %v309
        %v597 = vpop.f32.mrb[0].mxu0
        %v598 = vadd.f32 %v358, %v597
        %v599 = vpop.f32.mrb[0].mxu0
        %v600 = vpop.f32.mrb[0].mxu0
        %v601 = vadd.f32 %v358, %v600
        %v602 = vpop.f32.mrb[0].mxu0
        %603 = vmatprep.mubr.bf16.mxu0 0
        %604 = vmatmul.mubr.bf16.gmra.mrb[0].mxu0 %v310
        %v605 = vpop.f32.mrb[0].mxu0
        %v606 = vadd.f32 %v358, %v605
        %v607 = vpop.f32.mrb[0].mxu0
        %v608 = vpop.f32.mrb[0].mxu0
        %v609 = vadd.f32 %v358, %v608
        %v610 = vpop.f32.mrb[0].mxu0
        %611 = vmatprep.mubr.bf16.mxu0 0
        %612 = vmatmul.mubr.bf16.gmra.mrb[0].mxu0 %v311
        %v613 = vpop.f32.mrb[0].mxu0
        %v614 = vadd.f32 %v358, %v613
        %v615 = vpop.f32.mrb[0].mxu0
        %v616 = vpop.f32.mrb[0].mxu0
        %v617 = vadd.f32 %v358, %v616
        %v618 = vpop.f32.mrb[0].mxu0
        %619 = vmatprep.mubr.bf16.mxu0 0
        %620 = vmatmul.mubr.bf16.gmra.mrb[0].mxu0 %v312
        %v621 = vpop.f32.mrb[0].mxu0
        %v622 = vadd.f32 %v358, %v621
        %v623 = vpop.f32.mrb[0].mxu0
        %v624 = vpop.f32.mrb[0].mxu0
        %v625 = vadd.f32 %v358, %v624
        %v626 = vpop.f32.mrb[0].mxu0
        %627 = vdwg.mxu0
        %v628 = vpack.c.bf16 %v529, %v525
        %v629 = vpack.c.bf16 %v601, %v598
        %v630 = vpack.c.bf16 %v539, %v535
        %v631 = vpack.c.bf16 %v609, %v606
        %v632 = vpack.c.bf16 %v549, %v545
        %v633 = vpack.c.bf16 %v617, %v614
        %v634 = vpack.c.bf16 %v559, %v555
        %v635 = vpack.c.bf16 %v625, %v622
        %636 = vxpose.xlu0.b32.start [1/16] %v527, 128
        %637 = vxpose.xlu0.b32.cont [2/16] %v531, 128
        %638 = vxpose.xlu0.b32.cont [3/16] %v537, 128
        %639 = vxpose.xlu0.b32.cont [4/16] %v541, 128
        %640 = vxpose.xlu0.b32.cont [5/16] %v547, 128
        %641 = vxpose.xlu0.b32.cont [6/16] %v551, 128
        %642 = vxpose.xlu0.b32.cont [7/16] %v557, 128
        %643 = vxpose.xlu0.b32.cont [8/16] %v561, 128
        %644 = vxpose.xlu0.b32.cont [9/16] 0.0, 128
        %645 = vxpose.xlu0.b32.cont [10/16] 0.0, 128
        %646 = vxpose.xlu0.b32.cont [11/16] 0.0, 128
        %647 = vxpose.xlu0.b32.cont [12/16] 0.0, 128
        %648 = vxpose.xlu0.b32.cont [13/16] 0.0, 128
        %649 = vxpose.xlu0.b32.cont [14/16] 0.0, 128
        %650 = vxpose.xlu0.b32.cont [15/16] 0.0, 128
        %651 = vxpose.xlu0.b32.end [16/16] 0.0, 128
        %v652 = vpop.trf.xlu0
        %v653 = vpop.trf.xlu0
        %v654 = vpop.trf.xlu0
        %v655 = vpop.trf.xlu0
        %v656 = vpop.trf.xlu0
        %v657 = vpop.trf.xlu0
        %v658 = vpop.trf.xlu0
        %v659 = vpop.trf.xlu0
        %v660 = vpop.trf.xlu0
        %v661 = vpop.trf.xlu0
        %v662 = vpop.trf.xlu0
        %v663 = vpop.trf.xlu0
        %v664 = vpop.trf.xlu0
        %v665 = vpop.trf.xlu0
        %v666 = vpop.trf.xlu0
        %v667 = vpop.trf.xlu0
        %v668 = vpack.c.bf16 %v653, %v652
        %v669 = vpack.c.bf16 %v655, %v654
        %670 = vst [vmem:[#allocation2] sm:$0xff] 0.0
        %671 = vst [vmem:[#allocation2 + $0x8] sm:$0xff] 0.0
        %672 = vst [vmem:[#allocation2 + $0x10] sm:$0xff] 0.0
        %673 = vst [vmem:[#allocation2 + $0x18] sm:$0xff] 0.0
        %674 = vst [vmem:[#allocation2 + $0x20] sm:$0xff] 0.0
        %675 = vst [vmem:[#allocation2 + $0x28] sm:$0xff] 0.0
        %676 = vst [vmem:[#allocation2 + $0x30] sm:$0xff] 0.0
        %677 = vst [vmem:[#allocation2 + $0x38] sm:$0xff] 0.0
        %vm678 = vcmask 64512
        %v680 = vsel %vm678, %v628, 0
        %v683 = vsel %vm678, %v630, 0
        %v686 = vsel %vm678, %v632, 0
        %v689 = vsel %vm678, %v634, 0
        %vm691 = vcmask 1043456
        %v693 = vsel %vm691, %v668, 0
        %695 = vmatprep.subr.bf16.mxu0 0
        %696 = vmatpush1.bf16.msra.mxu0 %v693
        %697 = vmatprep.subr.bf16.mxu0 0
        %698 = vmatpush1.bf16.msra.mxu0 0
        %699 = vmatprep.subr.bf16.mxu0 0
        %700 = vmatpush1.bf16.msra.mxu0 0
        %701 = vmatprep.subr.bf16.mxu0 0
        %702 = vmatpush1.bf16.msra.mxu0 0
        %703 = vmatprep.subr.bf16.mxu0 0
        %704 = vmatpush1.bf16.msra.mxu0 0
        %705 = vmatprep.subr.bf16.mxu0 0
        %706 = vmatpush1.bf16.msra.mxu0 0
        %707 = vmatprep.subr.bf16.mxu0 0
        %708 = vmatpush1.bf16.msra.mxu0 0
        %709 = vmatprep.subr.bf16.mxu0 0
        %710 = vmatpush1.bf16.msra.mxu0 0
        %711 = vmatprep.subr.bf16.mxu0 0
        %712 = vmatpush1.bf16.msra.mxu0 0
        %713 = vmatprep.subr.bf16.mxu0 0
        %714 = vmatpush1.bf16.msra.mxu0 0
        %715 = vmatprep.subr.bf16.mxu0 0
        %716 = vmatpush1.bf16.msra.mxu0 0
        %717 = vmatprep.subr.bf16.mxu0 0
        %718 = vmatpush1.bf16.msra.mxu0 0
        %719 = vmatprep.subr.bf16.mxu0 0
        %720 = vmatpush1.bf16.msra.mxu0 0
        %721 = vmatprep.subr.bf16.mxu0 0
        %722 = vmatpush1.bf16.msra.mxu0 0
        %723 = vmatprep.subr.bf16.mxu0 0
        %724 = vmatpush1.bf16.msra.mxu0 0
        %725 = vmatprep.subr.bf16.mxu0 0
        %726 = vmatpush1.bf16.msra.mxu0 0
        %727 = vmatprep.mubr.bf16.mxu0 0
        %728 = vmatmul.mubr.bf16.gmra.mrb[0].mxu0 %v680
        %v729 = vpop.f32.mrb[0].mxu0
        %v730 = vadd.f32 0.0, %v729
        %v731 = vpop.f32.mrb[0].mxu0
        %v732 = vpop.f32.mrb[0].mxu0
        %v733 = vadd.f32 0.0, %v732
        %v734 = vpop.f32.mrb[0].mxu0
        %735 = vmatprep.mubr.bf16.mxu0 0
        %736 = vmatmul.mubr.bf16.gmra.mrb[0].mxu0 %v683
        %v737 = vpop.f32.mrb[0].mxu0
        %v738 = vadd.f32 0.0, %v737
        %v739 = vpop.f32.mrb[0].mxu0
        %v740 = vpop.f32.mrb[0].mxu0
        %v741 = vadd.f32 0.0, %v740
        %v742 = vpop.f32.mrb[0].mxu0
        %743 = vmatprep.mubr.bf16.mxu0 0
        %744 = vmatmul.mubr.bf16.gmra.mrb[0].mxu0 %v686
        %v745 = vpop.f32.mrb[0].mxu0
        %v746 = vadd.f32 0.0, %v745
        %v747 = vpop.f32.mrb[0].mxu0
        %v748 = vpop.f32.mrb[0].mxu0
        %v749 = vadd.f32 0.0, %v748
        %v750 = vpop.f32.mrb[0].mxu0
        %751 = vmatprep.mubr.bf16.mxu0 0
        %752 = vmatmul.mubr.bf16.gmra.mrb[0].mxu0 %v689
        %v753 = vpop.f32.mrb[0].mxu0
        %v754 = vadd.f32 0.0, %v753
        %v755 = vpop.f32.mrb[0].mxu0
        %v756 = vpop.f32.mrb[0].mxu0
        %v757 = vadd.f32 0.0, %v756
        %v758 = vpop.f32.mrb[0].mxu0
        %759 = vdwg.mxu0
        %v760 = vmul.f32 %v730, 0.35355338
        %v761 = vmul.f32 %v733, 0.35355338
        %v762 = vmul.f32 %v738, 0.35355338
        %v763 = vmul.f32 %v741, 0.35355338
        %v764 = vmul.f32 %v746, 0.35355338
        %v765 = vmul.f32 %v749, 0.35355338
        %v766 = vmul.f32 %v754, 0.35355338
        %v767 = vmul.f32 %v757, 0.35355338
        %vm768 = vcmask 523264
        %v769 = vsel %vm768, %v760, -inf
        %770 = vmax.xlane.f32.xlu0 %v769
        %v771 = vpop.xlane.xlu0 %770
        %v772 = vsel %vm768, %v761, -inf
        %773 = vmax.xlane.f32.xlu0 %v772
        %v774 = vpop.xlane.xlu0 %773
        %v775 = vsel %vm768, %v762, -inf
        %776 = vmax.xlane.f32.xlu0 %v775
        %v777 = vpop.xlane.xlu0 %776
        %v778 = vsel %vm768, %v763, -inf
        %779 = vmax.xlane.f32.xlu0 %v778
        %v780 = vpop.xlane.xlu0 %779
        %v781 = vsel %vm768, %v764, -inf
        %782 = vmax.xlane.f32.xlu0 %v781
        %v783 = vpop.xlane.xlu0 %782
        %v784 = vsel %vm768, %v765, -inf
        %785 = vmax.xlane.f32.xlu0 %v784
        %v786 = vpop.xlane.xlu0 %785
        %v787 = vsel %vm768, %v766, -inf
        %788 = vmax.xlane.f32.xlu0 %v787
        %v789 = vpop.xlane.xlu0 %788
        %v790 = vsel %vm768, %v767, -inf
        %791 = vmax.xlane.f32.xlu0 %v790
        %v792 = vpop.xlane.xlu0 %791
        %v793 = vsub.f32 %v760, %v771
        %v794 = vsub.f32 %v761, %v774
        %v795 = vsub.f32 %v762, %v777
        %v796 = vsub.f32 %v763, %v780
        %v797 = vsub.f32 %v764, %v783
        %v798 = vsub.f32 %v765, %v786
        %v799 = vsub.f32 %v766, %v789
        %v800 = vsub.f32 %v767, %v792
        %v801 = vmul.f32 %v793, 1.442695
        %v802 = vpow.pop %v801
        %v803 = vmul.f32 %v794, 1.442695
        %v804 = vpow.pop %v803
        %v805 = vmul.f32 %v795, 1.442695
        %v806 = vpow.pop %v805
        %v807 = vmul.f32 %v796, 1.442695
        %v808 = vpow.pop %v807
        %v809 = vmul.f32 %v797, 1.442695
        %v810 = vpow.pop %v809
        %v811 = vmul.f32 %v798, 1.442695
        %v812 = vpow.pop %v811
        %v813 = vmul.f32 %v799, 1.442695
        %v814 = vpow.pop %v813
        %v815 = vmul.f32 %v800, 1.442695
        %v816 = vpow.pop %v815
        %v817 = vsel %vm768, %v802, 0.0
        %818 = vadd.xlane.f32.xlu0 %v817
        %v819 = vpop.xlane.xlu0 %818
        %v820 = vsel %vm768, %v804, 0.0
        %821 = vadd.xlane.f32.xlu0 %v820
        %v822 = vpop.xlane.xlu0 %821
        %v823 = vsel %vm768, %v806, 0.0
        %824 = vadd.xlane.f32.xlu0 %v823
        %v825 = vpop.xlane.xlu0 %824
        %v826 = vsel %vm768, %v808, 0.0
        %827 = vadd.xlane.f32.xlu0 %v826
        %v828 = vpop.xlane.xlu0 %827
        %v829 = vsel %vm768, %v810, 0.0
        %830 = vadd.xlane.f32.xlu0 %v829
        %v831 = vpop.xlane.xlu0 %830
        %v832 = vsel %vm768, %v812, 0.0
        %833 = vadd.xlane.f32.xlu0 %v832
        %v834 = vpop.xlane.xlu0 %833
        %v835 = vsel %vm768, %v814, 0.0
        %836 = vadd.xlane.f32.xlu0 %v835
        %v837 = vpop.xlane.xlu0 %836
        %v838 = vsel %vm768, %v816, 0.0
        %839 = vadd.xlane.f32.xlu0 %v838
        %v840 = vpop.xlane.xlu0 %839
        %v841 = vrcp.pop %v819
        %v842 = vrcp.pop %v822
        %v843 = vrcp.pop %v825
        %v844 = vrcp.pop %v828
        %v845 = vrcp.pop %v831
        %v846 = vrcp.pop %v834
        %v847 = vrcp.pop %v837
        %v848 = vrcp.pop %v840
        %v849 = vmul.f32 %v802, %v841
        %v850 = vmul.f32 %v804, %v842
        %v851 = vmul.f32 %v806, %v843
        %v852 = vmul.f32 %v808, %v844
        %v853 = vmul.f32 %v810, %v845
        %v854 = vmul.f32 %v812, %v846
        %v855 = vmul.f32 %v814, %v847
        %v856 = vmul.f32 %v816, %v848
        %v857 = vpack.c.bf16 %v850, %v849
        %v858 = vpack.c.bf16 %v852, %v851
        %v859 = vpack.c.bf16 %v854, %v853
        %v860 = vpack.c.bf16 %v856, %v855
        %v862 = vsel %vm768, %v857, 0
        %v865 = vsel %vm768, %v858, 0
        %v868 = vsel %vm768, %v859, 0
        %v871 = vsel %vm768, %v860, 0
        %873 = vmatprep.subr.bf16.mxu0 0
        %874 = vmatpush1.bf16.msra.mxu0 %v629
        %875 = vmatprep.subr.bf16.mxu0 0
        %876 = vmatpush1.bf16.msra.mxu0 %v631
        %877 = vmatprep.subr.bf16.mxu0 0
        %878 = vmatpush1.bf16.msra.mxu0 %v633
        %879 = vmatprep.subr.bf16.mxu0 0
        %880 = vmatpush1.bf16.msra.mxu0 %v635
        %881 = vmatprep.subr.bf16.mxu0 0
        %882 = vmatpush1.bf16.msra.mxu0 0
        %883 = vmatprep.subr.bf16.mxu0 0
        %884 = vmatpush1.bf16.msra.mxu0 0
        %885 = vmatprep.subr.bf16.mxu0 0
        %886 = vmatpush1.bf16.msra.mxu0 0
        %887 = vmatprep.subr.bf16.mxu0 0
        %888 = vmatpush1.bf16.msra.mxu0 0
        %889 = vmatprep.subr.bf16.mxu0 0
        %890 = vmatpush1.bf16.msra.mxu0 0
        %891 = vmatprep.subr.bf16.mxu0 0
        %892 = vmatpush1.bf16.msra.mxu0 0
        %893 = vmatprep.subr.bf16.mxu0 0
        %894 = vmatpush1.bf16.msra.mxu0 0
        %895 = vmatprep.subr.bf16.mxu0 0
        %896 = vmatpush1.bf16.msra.mxu0 0
        %897 = vmatprep.subr.bf16.mxu0 0
        %898 = vmatpush1.bf16.msra.mxu0 0
        %899 = vmatprep.subr.bf16.mxu0 0
        %900 = vmatpush1.bf16.msra.mxu0 0
        %901 = vmatprep.subr.bf16.mxu0 0
        %902 = vmatpush1.bf16.msra.mxu0 0
        %903 = vmatprep.subr.bf16.mxu0 0
        %904 = vmatpush1.bf16.msra.mxu0 0
        %905 = vmatprep.mubr.bf16.mxu0 0
        %906 = vmatmul.mubr.bf16.gmra.mrb[0].mxu0 %v862
        %v907 = vpop.f32.mrb[0].mxu0
        %v908 = vadd.f32 0.0, %v907
        %v909 = vpop.f32.mrb[0].mxu0
        %v910 = vpop.f32.mrb[0].mxu0
        %v911 = vadd.f32 0.0, %v910
        %v912 = vpop.f32.mrb[0].mxu0
        %913 = vmatprep.mubr.bf16.mxu0 0
        %914 = vmatmul.mubr.bf16.gmra.mrb[0].mxu0 %v865
        %v915 = vpop.f32.mrb[0].mxu0
        %v916 = vadd.f32 0.0, %v915
        %v917 = vpop.f32.mrb[0].mxu0
        %v918 = vpop.f32.mrb[0].mxu0
        %v919 = vadd.f32 0.0, %v918
        %v920 = vpop.f32.mrb[0].mxu0
        %921 = vmatprep.mubr.bf16.mxu0 0
        %922 = vmatmul.mubr.bf16.gmra.mrb[0].mxu0 %v868
        %v923 = vpop.f32.mrb[0].mxu0
        %v924 = vadd.f32 0.0, %v923
        %v925 = vpop.f32.mrb[0].mxu0
        %v926 = vpop.f32.mrb[0].mxu0
        %v927 = vadd.f32 0.0, %v926
        %v928 = vpop.f32.mrb[0].mxu0
        %929 = vmatprep.mubr.bf16.mxu0 0
        %930 = vmatmul.mubr.bf16.gmra.mrb[0].mxu0 %v871
        %v931 = vpop.f32.mrb[0].mxu0
        %v932 = vadd.f32 0.0, %v931
        %v933 = vpop.f32.mrb[0].mxu0
        %v934 = vpop.f32.mrb[0].mxu0
        %v935 = vadd.f32 0.0, %v934
        %v936 = vpop.f32.mrb[0].mxu0
        %937 = vdwg.mxu0
        %938 = vst.msk [vmem:[#allocation2] sm:$0xff] %vm678, %v908
        %939 = vst.msk [vmem:[#allocation2 + $0x8] sm:$0xff] %vm678, %v911
        %940 = vst.msk [vmem:[#allocation2 + $0x10] sm:$0xff] %vm678, %v916
        %941 = vst.msk [vmem:[#allocation2 + $0x18] sm:$0xff] %vm678, %v919
        %942 = vst.msk [vmem:[#allocation2 + $0x20] sm:$0xff] %vm678, %v924
        %943 = vst.msk [vmem:[#allocation2 + $0x28] sm:$0xff] %vm678, %v927
        %944 = vst.msk [vmem:[#allocation2 + $0x30] sm:$0xff] %vm678, %v932
        %945 = vst.msk [vmem:[#allocation2 + $0x38] sm:$0xff] %vm678, %v935
        %950 = vrot.lane.b32.xlu0 %v628, 120
        %v951 = vpop.permute.xlu0 %950
        %952 = vrot.lane.b32.xlu0 %v630, 120
        %v953 = vpop.permute.xlu0 %952
        %954 = vrot.lane.b32.xlu0 %v632, 120
        %v955 = vpop.permute.xlu0 %954
        %956 = vrot.lane.b32.xlu0 %v634, 120
        %v957 = vpop.permute.xlu0 %956
        %v959 = vrot.slane %v668, 4
        %v961 = vsel %vm678, %v951, 0
        %v964 = vsel %vm678, %v953, 0
        %v967 = vsel %vm678, %v955, 0
        %v970 = vsel %vm678, %v957, 0
        %v973 = vsel %vm691, %v959, 0
        %975 = vmatprep.subr.bf16.mxu0 0
        %976 = vmatpush1.bf16.msra.mxu0 %v973
        %977 = vmatprep.subr.bf16.mxu0 0
        %978 = vmatpush1.bf16.msra.mxu0 0
        %979 = vmatprep.subr.bf16.mxu0 0
        %980 = vmatpush1.bf16.msra.mxu0 0
        %981 = vmatprep.subr.bf16.mxu0 0
        %982 = vmatpush1.bf16.msra.mxu0 0
        %983 = vmatprep.subr.bf16.mxu0 0
        %984 = vmatpush1.bf16.msra.mxu0 0
        %985 = vmatprep.subr.bf16.mxu0 0
        %986 = vmatpush1.bf16.msra.mxu0 0
        %987 = vmatprep.subr.bf16.mxu0 0
        %988 = vmatpush1.bf16.msra.mxu0 0
        %989 = vmatprep.subr.bf16.mxu0 0
        %990 = vmatpush1.bf16.msra.mxu0 0
        %991 = vmatprep.subr.bf16.mxu0 0
        %992 = vmatpush1.bf16.msra.mxu0 0
        %993 = vmatprep.subr.bf16.mxu0 0
        %994 = vmatpush1.bf16.msra.mxu0 0
        %995 = vmatprep.subr.bf16.mxu0 0
        %996 = vmatpush1.bf16.msra.mxu0 0
        %997 = vmatprep.subr.bf16.mxu0 0
        %998 = vmatpush1.bf16.msra.mxu0 0
        %999 = vmatprep.subr.bf16.mxu0 0
        %1000 = vmatpush1.bf16.msra.mxu0 0
        %1001 = vmatprep.subr.bf16.mxu0 0
        %1002 = vmatpush1.bf16.msra.mxu0 0
        %1003 = vmatprep.subr.bf16.mxu0 0
        %1004 = vmatpush1.bf16.msra.mxu0 0
        %1005 = vmatprep.subr.bf16.mxu0 0
        %1006 = vmatpush1.bf16.msra.mxu0 0
        %1007 = vmatprep.mubr.bf16.mxu0 0
        %1008 = vmatmul.mubr.bf16.gmra.mrb[0].mxu0 %v961
        %v1009 = vpop.f32.mrb[0].mxu0
        %v1010 = vadd.f32 0.0, %v1009
        %v1011 = vpop.f32.mrb[0].mxu0
        %v1012 = vpop.f32.mrb[0].mxu0
        %v1013 = vadd.f32 0.0, %v1012
        %v1014 = vpop.f32.mrb[0].mxu0
        %1015 = vmatprep.mubr.bf16.mxu0 0
        %1016 = vmatmul.mubr.bf16.gmra.mrb[0].mxu0 %v964
        %v1017 = vpop.f32.mrb[0].mxu0
        %v1018 = vadd.f32 0.0, %v1017
        %v1019 = vpop.f32.mrb[0].mxu0
        %v1020 = vpop.f32.mrb[0].mxu0
        %v1021 = vadd.f32 0.0, %v1020
        %v1022 = vpop.f32.mrb[0].mxu0
        %1023 = vmatprep.mubr.bf16.mxu0 0
        %1024 = vmatmul.mubr.bf16.gmra.mrb[0].mxu0 %v967
        %v1025 = vpop.f32.mrb[0].mxu0
        %v1026 = vadd.f32 0.0, %v1025
        %v1027 = vpop.f32.mrb[0].mxu0
        %v1028 = vpop.f32.mrb[0].mxu0
        %v1029 = vadd.f32 0.0, %v1028
        %v1030 = vpop.f32.mrb[0].mxu0
        %1031 = vmatprep.mubr.bf16.mxu0 0
        %1032 = vmatmul.mubr.bf16.gmra.mrb[0].mxu0 %v970
        %v1033 = vpop.f32.mrb[0].mxu0
        %v1034 = vadd.f32 0.0, %v1033
        %v1035 = vpop.f32.mrb[0].mxu0
        %v1036 = vpop.f32.mrb[0].mxu0
        %v1037 = vadd.f32 0.0, %v1036
        %v1038 = vpop.f32.mrb[0].mxu0
        %1039 = vdwg.mxu0
        %v1040 = vmul.f32 %v1010, 0.35355338
        %v1041 = vmul.f32 %v1013, 0.35355338
        %v1042 = vmul.f32 %v1018, 0.35355338
        %v1043 = vmul.f32 %v1021, 0.35355338
        %v1044 = vmul.f32 %v1026, 0.35355338
        %v1045 = vmul.f32 %v1029, 0.35355338
        %v1046 = vmul.f32 %v1034, 0.35355338
        %v1047 = vmul.f32 %v1037, 0.35355338
        %v1048 = vsel %vm768, %v1040, -inf
        %1049 = vmax.xlane.f32.xlu0 %v1048
        %v1050 = vpop.xlane.xlu0 %1049
        %v1051 = vsel %vm768, %v1041, -inf
        %1052 = vmax.xlane.f32.xlu0 %v1051
        %v1053 = vpop.xlane.xlu0 %1052
        %v1054 = vsel %vm768, %v1042, -inf
        %1055 = vmax.xlane.f32.xlu0 %v1054
        %v1056 = vpop.xlane.xlu0 %1055
        %v1057 = vsel %vm768, %v1043, -inf
        %1058 = vmax.xlane.f32.xlu0 %v1057
        %v1059 = vpop.xlane.xlu0 %1058
        %v1060 = vsel %vm768, %v1044, -inf
        %1061 = vmax.xlane.f32.xlu0 %v1060
        %v1062 = vpop.xlane.xlu0 %1061
        %v1063 = vsel %vm768, %v1045, -inf
        %1064 = vmax.xlane.f32.xlu0 %v1063
        %v1065 = vpop.xlane.xlu0 %1064
        %v1066 = vsel %vm768, %v1046, -inf
        %1067 = vmax.xlane.f32.xlu0 %v1066
        %v1068 = vpop.xlane.xlu0 %1067
        %v1069 = vsel %vm768, %v1047, -inf
        %1070 = vmax.xlane.f32.xlu0 %v1069
        %v1071 = vpop.xlane.xlu0 %1070
        %v1072 = vsub.f32 %v1040, %v1050
        %v1073 = vsub.f32 %v1041, %v1053
        %v1074 = vsub.f32 %v1042, %v1056
        %v1075 = vsub.f32 %v1043, %v1059
        %v1076 = vsub.f32 %v1044, %v1062
        %v1077 = vsub.f32 %v1045, %v1065
        %v1078 = vsub.f32 %v1046, %v1068
        %v1079 = vsub.f32 %v1047, %v1071
        %v1080 = vmul.f32 %v1072, 1.442695
        %v1081 = vpow.pop %v1080
        %v1082 = vmul.f32 %v1073, 1.442695
        %v1083 = vpow.pop %v1082
        %v1084 = vmul.f32 %v1074, 1.442695
        %v1085 = vpow.pop %v1084
        %v1086 = vmul.f32 %v1075, 1.442695
        %v1087 = vpow.pop %v1086
        %v1088 = vmul.f32 %v1076, 1.442695
        %v1089 = vpow.pop %v1088
        %v1090 = vmul.f32 %v1077, 1.442695
        %v1091 = vpow.pop %v1090
        %v1092 = vmul.f32 %v1078, 1.442695
        %v1093 = vpow.pop %v1092
        %v1094 = vmul.f32 %v1079, 1.442695
        %v1095 = vpow.pop %v1094
        %v1096 = vsel %vm768, %v1081, 0.0
        %1097 = vadd.xlane.f32.xlu0 %v1096
        %v1098 = vpop.xlane.xlu0 %1097
        %v1099 = vsel %vm768, %v1083, 0.0
        %1100 = vadd.xlane.f32.xlu0 %v1099
        %v1101 = vpop.xlane.xlu0 %1100
        %v1102 = vsel %vm768, %v1085, 0.0
        %1103 = vadd.xlane.f32.xlu0 %v1102
        %v1104 = vpop.xlane.xlu0 %1103
        %v1105 = vsel %vm768, %v1087, 0.0
        %1106 = vadd.xlane.f32.xlu0 %v1105
        %v1107 = vpop.xlane.xlu0 %1106
        %v1108 = vsel %vm768, %v1089, 0.0
        %1109 = vadd.xlane.f32.xlu0 %v1108
        %v1110 = vpop.xlane.xlu0 %1109
        %v1111 = vsel %vm768, %v1091, 0.0
        %1112 = vadd.xlane.f32.xlu0 %v1111
        %v1113 = vpop.xlane.xlu0 %1112
        %v1114 = vsel %vm768, %v1093, 0.0
        %1115 = vadd.xlane.f32.xlu0 %v1114
        %v1116 = vpop.xlane.xlu0 %1115
        %v1117 = vsel %vm768, %v1095, 0.0
        %1118 = vadd.xlane.f32.xlu0 %v1117
        %v1119 = vpop.xlane.xlu0 %1118
        %v1120 = vrcp.pop %v1098
        %v1121 = vrcp.pop %v1101
        %v1122 = vrcp.pop %v1104
        %v1123 = vrcp.pop %v1107
        %v1124 = vrcp.pop %v1110
        %v1125 = vrcp.pop %v1113
        %v1126 = vrcp.pop %v1116
        %v1127 = vrcp.pop %v1119
        %v1128 = vmul.f32 %v1081, %v1120
        %v1129 = vmul.f32 %v1083, %v1121
        %v1130 = vmul.f32 %v1085, %v1122
        %v1131 = vmul.f32 %v1087, %v1123
        %v1132 = vmul.f32 %v1089, %v1124
        %v1133 = vmul.f32 %v1091, %v1125
        %v1134 = vmul.f32 %v1093, %v1126
        %v1135 = vmul.f32 %v1095, %v1127
        %v1136 = vpack.c.bf16 %v1129, %v1128
        %v1137 = vpack.c.bf16 %v1131, %v1130
        %v1138 = vpack.c.bf16 %v1133, %v1132
        %v1139 = vpack.c.bf16 %v1135, %v1134
        %1144 = vrot.lane.b32.xlu0 %v629, 120
        %v1145 = vpop.permute.xlu0 %1144
        %1146 = vrot.lane.b32.xlu0 %v631, 120
        %v1147 = vpop.permute.xlu0 %1146
        %1148 = vrot.lane.b32.xlu0 %v633, 120
        %v1149 = vpop.permute.xlu0 %1148
        %1150 = vrot.lane.b32.xlu0 %v635, 120
        %v1151 = vpop.permute.xlu0 %1150
        %v1157 = vsel %vm768, %v1136, 0
        %v1160 = vsel %vm768, %v1137, 0
        %v1163 = vsel %vm768, %v1138, 0
        %v1166 = vsel %vm768, %v1139, 0
        %1168 = vmatprep.subr.bf16.mxu0 0
        %1169 = vmatpush1.bf16.msra.mxu0 %v1145
        %1170 = vmatprep.subr.bf16.mxu0 0
        %1171 = vmatpush1.bf16.msra.mxu0 %v1147
        %1172 = vmatprep.subr.bf16.mxu0 0
        %1173 = vmatpush1.bf16.msra.mxu0 %v1149
        %1174 = vmatprep.subr.bf16.mxu0 0
        %1175 = vmatpush1.bf16.msra.mxu0 %v1151
        %1176 = vmatprep.subr.bf16.mxu0 0
        %1177 = vmatpush1.bf16.msra.mxu0 0
        %1178 = vmatprep.subr.bf16.mxu0 0
        %1179 = vmatpush1.bf16.msra.mxu0 0
        %1180 = vmatprep.subr.bf16.mxu0 0
        %1181 = vmatpush1.bf16.msra.mxu0 0
        %1182 = vmatprep.subr.bf16.mxu0 0
        %1183 = vmatpush1.bf16.msra.mxu0 0
        %1184 = vmatprep.subr.bf16.mxu0 0
        %1185 = vmatpush1.bf16.msra.mxu0 0
        %1186 = vmatprep.subr.bf16.mxu0 0
        %1187 = vmatpush1.bf16.msra.mxu0 0
        %1188 = vmatprep.subr.bf16.mxu0 0
        %1189 = vmatpush1.bf16.msra.mxu0 0
        %1190 = vmatprep.subr.bf16.mxu0 0
        %1191 = vmatpush1.bf16.msra.mxu0 0
        %1192 = vmatprep.subr.bf16.mxu0 0
        %1193 = vmatpush1.bf16.msra.mxu0 0
        %1194 = vmatprep.subr.bf16.mxu0 0
        %1195 = vmatpush1.bf16.msra.mxu0 0
        %1196 = vmatprep.subr.bf16.mxu0 0
        %1197 = vmatpush1.bf16.msra.mxu0 0
        %1198 = vmatprep.subr.bf16.mxu0 0
        %1199 = vmatpush1.bf16.msra.mxu0 0
        %1200 = vmatprep.mubr.bf16.mxu0 0
        %1201 = vmatmul.mubr.bf16.gmra.mrb[0].mxu0 %v1157
        %v1202 = vpop.f32.mrb[0].mxu0
        %v1203 = vadd.f32 0.0, %v1202
        %v1204 = vpop.f32.mrb[0].mxu0
        %v1205 = vpop.f32.mrb[0].mxu0
        %v1206 = vadd.f32 0.0, %v1205
        %v1207 = vpop.f32.mrb[0].mxu0
        %1208 = vmatprep.mubr.bf16.mxu0 0
        %1209 = vmatmul.mubr.bf16.gmra.mrb[0].mxu0 %v1160
        %v1210 = vpop.f32.mrb[0].mxu0
        %v1211 = vadd.f32 0.0, %v1210
        %v1212 = vpop.f32.mrb[0].mxu0
        %v1213 = vpop.f32.mrb[0].mxu0
        %v1214 = vadd.f32 0.0, %v1213
        %v1215 = vpop.f32.mrb[0].mxu0
        %1216 = vmatprep.mubr.bf16.mxu0 0
        %1217 = vmatmul.mubr.bf16.gmra.mrb[0].mxu0 %v1163
        %v1218 = vpop.f32.mrb[0].mxu0
        %v1219 = vadd.f32 0.0, %v1218
        %v1220 = vpop.f32.mrb[0].mxu0
        %v1221 = vpop.f32.mrb[0].mxu0
        %v1222 = vadd.f32 0.0, %v1221
        %v1223 = vpop.f32.mrb[0].mxu0
        %1224 = vmatprep.mubr.bf16.mxu0 0
        %1225 = vmatmul.mubr.bf16.gmra.mrb[0].mxu0 %v1166
        %v1226 = vpop.f32.mrb[0].mxu0
        %v1227 = vadd.f32 0.0, %v1226
        %v1228 = vpop.f32.mrb[0].mxu0
        %v1229 = vpop.f32.mrb[0].mxu0
        %v1230 = vadd.f32 0.0, %v1229
        %v1231 = vpop.f32.mrb[0].mxu0
        %1232 = vdwg.mxu0
        %1241 = vrot.lane.b32.xlu0 %v1203, 8
        %v1242 = vpop.permute.xlu0 %1241
        %1243 = vrot.lane.b32.xlu0 %v1206, 8
        %v1244 = vpop.permute.xlu0 %1243
        %1245 = vrot.lane.b32.xlu0 %v1211, 8
        %v1246 = vpop.permute.xlu0 %1245
        %1247 = vrot.lane.b32.xlu0 %v1214, 8
        %v1248 = vpop.permute.xlu0 %1247
        %1249 = vrot.lane.b32.xlu0 %v1219, 8
        %v1250 = vpop.permute.xlu0 %1249
        %1251 = vrot.lane.b32.xlu0 %v1222, 8
        %v1252 = vpop.permute.xlu0 %1251
        %1253 = vrot.lane.b32.xlu0 %v1227, 8
        %v1254 = vpop.permute.xlu0 %1253
        %1255 = vrot.lane.b32.xlu0 %v1230, 8
        %v1256 = vpop.permute.xlu0 %1255
        %vm1265 = vcmask 130112
        %1266 = vst.msk [vmem:[#allocation2] sm:$0xff] %vm1265, %v1242
        %1267 = vst.msk [vmem:[#allocation2 + $0x8] sm:$0xff] %vm1265, %v1244
        %1268 = vst.msk [vmem:[#allocation2 + $0x10] sm:$0xff] %vm1265, %v1246
        %1269 = vst.msk [vmem:[#allocation2 + $0x18] sm:$0xff] %vm1265, %v1248
        %1270 = vst.msk [vmem:[#allocation2 + $0x20] sm:$0xff] %vm1265, %v1250
        %1271 = vst.msk [vmem:[#allocation2 + $0x28] sm:$0xff] %vm1265, %v1252
        %1272 = vst.msk [vmem:[#allocation2 + $0x30] sm:$0xff] %vm1265, %v1254
        %1273 = vst.msk [vmem:[#allocation2 + $0x38] sm:$0xff] %vm1265, %v1256
        %1274 = vrot.lane.b32.xlu0 %v628, 112
        %v1275 = vpop.permute.xlu0 %1274
        %1276 = vrot.lane.b32.xlu0 %v630, 112
        %v1277 = vpop.permute.xlu0 %1276
        %1278 = vrot.lane.b32.xlu0 %v632, 112
        %v1279 = vpop.permute.xlu0 %1278
        %1280 = vrot.lane.b32.xlu0 %v634, 112
        %v1281 = vpop.permute.xlu0 %1280
        %v1283 = vsel %vm678, %v1275, 0
        %v1286 = vsel %vm678, %v1277, 0
        %v1289 = vsel %vm678, %v1279, 0
        %v1292 = vsel %vm678, %v1281, 0
        %v1295 = vsel %vm691, %v669, 0
        %1297 = vmatprep.subr.bf16.mxu0 0
        %1298 = vmatpush1.bf16.msra.mxu0 %v1295
        %1299 = vmatprep.subr.bf16.mxu0 0
        %1300 = vmatpush1.bf16.msra.mxu0 0
        %1301 = vmatprep.subr.bf16.mxu0 0
        %1302 = vmatpush1.bf16.msra.mxu0 0
        %1303 = vmatprep.subr.bf16.mxu0 0
        %1304 = vmatpush1.bf16.msra.mxu0 0
        %1305 = vmatprep.subr.bf16.mxu0 0
        %1306 = vmatpush1.bf16.msra.mxu0 0
        %1307 = vmatprep.subr.bf16.mxu0 0
        %1308 = vmatpush1.bf16.msra.mxu0 0
        %1309 = vmatprep.subr.bf16.mxu0 0
        %1310 = vmatpush1.bf16.msra.mxu0 0
        %1311 = vmatprep.subr.bf16.mxu0 0
        %1312 = vmatpush1.bf16.msra.mxu0 0
        %1313 = vmatprep.subr.bf16.mxu0 0
        %1314 = vmatpush1.bf16.msra.mxu0 0
        %1315 = vmatprep.subr.bf16.mxu0 0
        %1316 = vmatpush1.bf16.msra.mxu0 0
        %1317 = vmatprep.subr.bf16.mxu0 0
        %1318 = vmatpush1.bf16.msra.mxu0 0
        %1319 = vmatprep.subr.bf16.mxu0 0
        %1320 = vmatpush1.bf16.msra.mxu0 0
        %1321 = vmatprep.subr.bf16.mxu0 0
        %1322 = vmatpush1.bf16.msra.mxu0 0
        %1323 = vmatprep.subr.bf16.mxu0 0
        %1324 = vmatpush1.bf16.msra.mxu0 0
        %1325 = vmatprep.subr.bf16.mxu0 0
        %1326 = vmatpush1.bf16.msra.mxu0 0
        %1327 = vmatprep.subr.bf16.mxu0 0
        %1328 = vmatpush1.bf16.msra.mxu0 0
        %1329 = vmatprep.mubr.bf16.mxu0 0
        %1330 = vmatmul.mubr.bf16.gmra.mrb[0].mxu0 %v1283
        %v1331 = vpop.f32.mrb[0].mxu0
        %v1332 = vadd.f32 0.0, %v1331
        %v1333 = vpop.f32.mrb[0].mxu0
        %v1334 = vpop.f32.mrb[0].mxu0
        %v1335 = vadd.f32 0.0, %v1334
        %v1336 = vpop.f32.mrb[0].mxu0
        %1337 = vmatprep.mubr.bf16.mxu0 0
        %1338 = vmatmul.mubr.bf16.gmra.mrb[0].mxu0 %v1286
        %v1339 = vpop.f32.mrb[0].mxu0
        %v1340 = vadd.f32 0.0, %v1339
        %v1341 = vpop.f32.mrb[0].mxu0
        %v1342 = vpop.f32.mrb[0].mxu0
        %v1343 = vadd.f32 0.0, %v1342
        %v1344 = vpop.f32.mrb[0].mxu0
        %1345 = vmatprep.mubr.bf16.mxu0 0
        %1346 = vmatmul.mubr.bf16.gmra.mrb[0].mxu0 %v1289
        %v1347 = vpop.f32.mrb[0].mxu0
        %v1348 = vadd.f32 0.0, %v1347
        %v1349 = vpop.f32.mrb[0].mxu0
        %v1350 = vpop.f32.mrb[0].mxu0
        %v1351 = vadd.f32 0.0, %v1350
        %v1352 = vpop.f32.mrb[0].mxu0
        %1353 = vmatprep.mubr.bf16.mxu0 0
        %1354 = vmatmul.mubr.bf16.gmra.mrb[0].mxu0 %v1292
        %v1355 = vpop.f32.mrb[0].mxu0
        %v1356 = vadd.f32 0.0, %v1355
        %v1357 = vpop.f32.mrb[0].mxu0
        %v1358 = vpop.f32.mrb[0].mxu0
        %v1359 = vadd.f32 0.0, %v1358
        %v1360 = vpop.f32.mrb[0].mxu0
        %1361 = vdwg.mxu0
        %v1362 = vmul.f32 %v1332, 0.35355338
        %v1363 = vmul.f32 %v1335, 0.35355338
        %v1364 = vmul.f32 %v1340, 0.35355338
        %v1365 = vmul.f32 %v1343, 0.35355338
        %v1366 = vmul.f32 %v1348, 0.35355338
        %v1367 = vmul.f32 %v1351, 0.35355338
        %v1368 = vmul.f32 %v1356, 0.35355338
        %v1369 = vmul.f32 %v1359, 0.35355338
        %v1370 = vsel %vm768, %v1362, -inf
        %1371 = vmax.xlane.f32.xlu0 %v1370
        %v1372 = vpop.xlane.xlu0 %1371
        %v1373 = vsel %vm768, %v1363, -inf
        %1374 = vmax.xlane.f32.xlu0 %v1373
        %v1375 = vpop.xlane.xlu0 %1374
        %v1376 = vsel %vm768, %v1364, -inf
        %1377 = vmax.xlane.f32.xlu0 %v1376
        %v1378 = vpop.xlane.xlu0 %1377
        %v1379 = vsel %vm768, %v1365, -inf
        %1380 = vmax.xlane.f32.xlu0 %v1379
        %v1381 = vpop.xlane.xlu0 %1380
        %v1382 = vsel %vm768, %v1366, -inf
        %1383 = vmax.xlane.f32.xlu0 %v1382
        %v1384 = vpop.xlane.xlu0 %1383
        %v1385 = vsel %vm768, %v1367, -inf
        %1386 = vmax.xlane.f32.xlu0 %v1385
        %v1387 = vpop.xlane.xlu0 %1386
        %v1388 = vsel %vm768, %v1368, -inf
        %1389 = vmax.xlane.f32.xlu0 %v1388
        %v1390 = vpop.xlane.xlu0 %1389
        %v1391 = vsel %vm768, %v1369, -inf
        %1392 = vmax.xlane.f32.xlu0 %v1391
        %v1393 = vpop.xlane.xlu0 %1392
        %v1394 = vsub.f32 %v1362, %v1372
        %v1395 = vsub.f32 %v1363, %v1375
        %v1396 = vsub.f32 %v1364, %v1378
        %v1397 = vsub.f32 %v1365, %v1381
        %v1398 = vsub.f32 %v1366, %v1384
        %v1399 = vsub.f32 %v1367, %v1387
        %v1400 = vsub.f32 %v1368, %v1390
        %v1401 = vsub.f32 %v1369, %v1393
        %v1402 = vmul.f32 %v1394, 1.442695
        %v1403 = vpow.pop %v1402
        %v1404 = vmul.f32 %v1395, 1.442695
        %v1405 = vpow.pop %v1404
        %v1406 = vmul.f32 %v1396, 1.442695
        %v1407 = vpow.pop %v1406
        %v1408 = vmul.f32 %v1397, 1.442695
        %v1409 = vpow.pop %v1408
        %v1410 = vmul.f32 %v1398, 1.442695
        %v1411 = vpow.pop %v1410
        %v1412 = vmul.f32 %v1399, 1.442695
        %v1413 = vpow.pop %v1412
        %v1414 = vmul.f32 %v1400, 1.442695
        %v1415 = vpow.pop %v1414
        %v1416 = vmul.f32 %v1401, 1.442695
        %v1417 = vpow.pop %v1416
        %v1418 = vsel %vm768, %v1403, 0.0
        %1419 = vadd.xlane.f32.xlu0 %v1418
        %v1420 = vpop.xlane.xlu0 %1419
        %v1421 = vsel %vm768, %v1405, 0.0
        %1422 = vadd.xlane.f32.xlu0 %v1421
        %v1423 = vpop.xlane.xlu0 %1422
        %v1424 = vsel %vm768, %v1407, 0.0
        %1425 = vadd.xlane.f32.xlu0 %v1424
        %v1426 = vpop.xlane.xlu0 %1425
        %v1427 = vsel %vm768, %v1409, 0.0
        %1428 = vadd.xlane.f32.xlu0 %v1427
        %v1429 = vpop.xlane.xlu0 %1428
        %v1430 = vsel %vm768, %v1411, 0.0
        %1431 = vadd.xlane.f32.xlu0 %v1430
        %v1432 = vpop.xlane.xlu0 %1431
        %v1433 = vsel %vm768, %v1413, 0.0
        %1434 = vadd.xlane.f32.xlu0 %v1433
        %v1435 = vpop.xlane.xlu0 %1434
        %v1436 = vsel %vm768, %v1415, 0.0
        %1437 = vadd.xlane.f32.xlu0 %v1436
        %v1438 = vpop.xlane.xlu0 %1437
        %v1439 = vsel %vm768, %v1417, 0.0
        %1440 = vadd.xlane.f32.xlu0 %v1439
        %v1441 = vpop.xlane.xlu0 %1440
        %v1442 = vrcp.pop %v1420
        %v1443 = vrcp.pop %v1423
        %v1444 = vrcp.pop %v1426
        %v1445 = vrcp.pop %v1429
        %v1446 = vrcp.pop %v1432
        %v1447 = vrcp.pop %v1435
        %v1448 = vrcp.pop %v1438
        %v1449 = vrcp.pop %v1441
        %v1450 = vmul.f32 %v1403, %v1442
        %v1451 = vmul.f32 %v1405, %v1443
        %v1452 = vmul.f32 %v1407, %v1444
        %v1453 = vmul.f32 %v1409, %v1445
        %v1454 = vmul.f32 %v1411, %v1446
        %v1455 = vmul.f32 %v1413, %v1447
        %v1456 = vmul.f32 %v1415, %v1448
        %v1457 = vmul.f32 %v1417, %v1449
        %v1458 = vpack.c.bf16 %v1451, %v1450
        %v1459 = vpack.c.bf16 %v1453, %v1452
        %v1460 = vpack.c.bf16 %v1455, %v1454
        %v1461 = vpack.c.bf16 %v1457, %v1456
        %1462 = vrot.lane.b32.xlu0 %v629, 112
        %v1463 = vpop.permute.xlu0 %1462
        %1464 = vrot.lane.b32.xlu0 %v631, 112
        %v1465 = vpop.permute.xlu0 %1464
        %1466 = vrot.lane.b32.xlu0 %v633, 112
        %v1467 = vpop.permute.xlu0 %1466
        %1468 = vrot.lane.b32.xlu0 %v635, 112
        %v1469 = vpop.permute.xlu0 %1468
        %v1475 = vsel %vm768, %v1458, 0
        %v1478 = vsel %vm768, %v1459, 0
        %v1481 = vsel %vm768, %v1460, 0
        %v1484 = vsel %vm768, %v1461, 0
        %1486 = vmatprep.subr.bf16.mxu0 0
        %1487 = vmatpush1.bf16.msra.mxu0 %v1463
        %1488 = vmatprep.subr.bf16.mxu0 0
        %1489 = vmatpush1.bf16.msra.mxu0 %v1465
        %1490 = vmatprep.subr.bf16.mxu0 0
        %1491 = vmatpush1.bf16.msra.mxu0 %v1467
        %1492 = vmatprep.subr.bf16.mxu0 0
        %1493 = vmatpush1.bf16.msra.mxu0 %v1469
        %1494 = vmatprep.subr.bf16.mxu0 0
        %1495 = vmatpush1.bf16.msra.mxu0 0
        %1496 = vmatprep.subr.bf16.mxu0 0
        %1497 = vmatpush1.bf16.msra.mxu0 0
        %1498 = vmatprep.subr.bf16.mxu0 0
        %1499 = vmatpush1.bf16.msra.mxu0 0
        %1500 = vmatprep.subr.bf16.mxu0 0
        %1501 = vmatpush1.bf16.msra.mxu0 0
        %1502 = vmatprep.subr.bf16.mxu0 0
        %1503 = vmatpush1.bf16.msra.mxu0 0
        %1504 = vmatprep.subr.bf16.mxu0 0
        %1505 = vmatpush1.bf16.msra.mxu0 0
        %1506 = vmatprep.subr.bf16.mxu0 0
        %1507 = vmatpush1.bf16.msra.mxu0 0
        %1508 = vmatprep.subr.bf16.mxu0 0
        %1509 = vmatpush1.bf16.msra.mxu0 0
        %1510 = vmatprep.subr.bf16.mxu0 0
        %1511 = vmatpush1.bf16.msra.mxu0 0
        %1512 = vmatprep.subr.bf16.mxu0 0
        %1513 = vmatpush1.bf16.msra.mxu0 0
        %1514 = vmatprep.subr.bf16.mxu0 0
        %1515 = vmatpush1.bf16.msra.mxu0 0
        %1516 = vmatprep.subr.bf16.mxu0 0
        %1517 = vmatpush1.bf16.msra.mxu0 0
        %1518 = vmatprep.mubr.bf16.mxu0 0
        %1519 = vmatmul.mubr.bf16.gmra.mrb[0].mxu0 %v1475
        %v1520 = vpop.f32.mrb[0].mxu0
        %v1521 = vadd.f32 0.0, %v1520
        %v1522 = vpop.f32.mrb[0].mxu0
        %v1523 = vpop.f32.mrb[0].mxu0
        %v1524 = vadd.f32 0.0, %v1523
        %v1525 = vpop.f32.mrb[0].mxu0
        %1526 = vmatprep.mubr.bf16.mxu0 0
        %1527 = vmatmul.mubr.bf16.gmra.mrb[0].mxu0 %v1478
        %v1528 = vpop.f32.mrb[0].mxu0
        %v1529 = vadd.f32 0.0, %v1528
        %v1530 = vpop.f32.mrb[0].mxu0
        %v1531 = vpop.f32.mrb[0].mxu0
        %v1532 = vadd.f32 0.0, %v1531
        %v1533 = vpop.f32.mrb[0].mxu0
        %1534 = vmatprep.mubr.bf16.mxu0 0
        %1535 = vmatmul.mubr.bf16.gmra.mrb[0].mxu0 %v1481
        %v1536 = vpop.f32.mrb[0].mxu0
        %v1537 = vadd.f32 0.0, %v1536
        %v1538 = vpop.f32.mrb[0].mxu0
        %v1539 = vpop.f32.mrb[0].mxu0
        %v1540 = vadd.f32 0.0, %v1539
        %v1541 = vpop.f32.mrb[0].mxu0
        %1542 = vmatprep.mubr.bf16.mxu0 0
        %1543 = vmatmul.mubr.bf16.gmra.mrb[0].mxu0 %v1484
        %v1544 = vpop.f32.mrb[0].mxu0
        %v1545 = vadd.f32 0.0, %v1544
        %v1546 = vpop.f32.mrb[0].mxu0
        %v1547 = vpop.f32.mrb[0].mxu0
        %v1548 = vadd.f32 0.0, %v1547
        %v1549 = vpop.f32.mrb[0].mxu0
        %1550 = vdwg.mxu0
        %1559 = vrot.lane.b32.xlu0 %v1521, 16
        %v1560 = vpop.permute.xlu0 %1559
        %1561 = vrot.lane.b32.xlu0 %v1524, 16
        %v1562 = vpop.permute.xlu0 %1561
        %1563 = vrot.lane.b32.xlu0 %v1529, 16
        %v1564 = vpop.permute.xlu0 %1563
        %1565 = vrot.lane.b32.xlu0 %v1532, 16
        %v1566 = vpop.permute.xlu0 %1565
        %1567 = vrot.lane.b32.xlu0 %v1537, 16
        %v1568 = vpop.permute.xlu0 %1567
        %1569 = vrot.lane.b32.xlu0 %v1540, 16
        %v1570 = vpop.permute.xlu0 %1569
        %1571 = vrot.lane.b32.xlu0 %v1545, 16
        %v1572 = vpop.permute.xlu0 %1571
        %1573 = vrot.lane.b32.xlu0 %v1548, 16
        %v1574 = vpop.permute.xlu0 %1573
        %vm1583 = vcmask 195712
        %1584 = vst.msk [vmem:[#allocation2] sm:$0xff] %vm1583, %v1560
        %1585 = vst.msk [vmem:[#allocation2 + $0x8] sm:$0xff] %vm1583, %v1562
        %1586 = vst.msk [vmem:[#allocation2 + $0x10] sm:$0xff] %vm1583, %v1564
        %1587 = vst.msk [vmem:[#allocation2 + $0x18] sm:$0xff] %vm1583, %v1566
        %1588 = vst.msk [vmem:[#allocation2 + $0x20] sm:$0xff] %vm1583, %v1568
        %1589 = vst.msk [vmem:[#allocation2 + $0x28] sm:$0xff] %vm1583, %v1570
        %1590 = vst.msk [vmem:[#allocation2 + $0x30] sm:$0xff] %vm1583, %v1572
        %1591 = vst.msk [vmem:[#allocation2 + $0x38] sm:$0xff] %vm1583, %v1574
        %1592 = vrot.lane.b32.xlu0 %v628, 104
        %v1593 = vpop.permute.xlu0 %1592
        %1594 = vrot.lane.b32.xlu0 %v630, 104
        %v1595 = vpop.permute.xlu0 %1594
        %1596 = vrot.lane.b32.xlu0 %v632, 104
        %v1597 = vpop.permute.xlu0 %1596
        %1598 = vrot.lane.b32.xlu0 %v634, 104
        %v1599 = vpop.permute.xlu0 %1598
        %v1601 = vrot.slane %v669, 4
        %v1603 = vsel %vm678, %v1593, 0
        %v1606 = vsel %vm678, %v1595, 0
        %v1609 = vsel %vm678, %v1597, 0
        %v1612 = vsel %vm678, %v1599, 0
        %v1615 = vsel %vm691, %v1601, 0
        %1617 = vmatprep.subr.bf16.mxu0 0
        %1618 = vmatpush1.bf16.msra.mxu0 %v1615
        %1619 = vmatprep.subr.bf16.mxu0 0
        %1620 = vmatpush1.bf16.msra.mxu0 0
        %1621 = vmatprep.subr.bf16.mxu0 0
        %1622 = vmatpush1.bf16.msra.mxu0 0
        %1623 = vmatprep.subr.bf16.mxu0 0
        %1624 = vmatpush1.bf16.msra.mxu0 0
        %1625 = vmatprep.subr.bf16.mxu0 0
        %1626 = vmatpush1.bf16.msra.mxu0 0
        %1627 = vmatprep.subr.bf16.mxu0 0
        %1628 = vmatpush1.bf16.msra.mxu0 0
        %1629 = vmatprep.subr.bf16.mxu0 0
        %1630 = vmatpush1.bf16.msra.mxu0 0
        %1631 = vmatprep.subr.bf16.mxu0 0
        %1632 = vmatpush1.bf16.msra.mxu0 0
        %1633 = vmatprep.subr.bf16.mxu0 0
        %1634 = vmatpush1.bf16.msra.mxu0 0
        %1635 = vmatprep.subr.bf16.mxu0 0
        %1636 = vmatpush1.bf16.msra.mxu0 0
        %1637 = vmatprep.subr.bf16.mxu0 0
        %1638 = vmatpush1.bf16.msra.mxu0 0
        %1639 = vmatprep.subr.bf16.mxu0 0
        %1640 = vmatpush1.bf16.msra.mxu0 0
        %1641 = vmatprep.subr.bf16.mxu0 0
        %1642 = vmatpush1.bf16.msra.mxu0 0
        %1643 = vmatprep.subr.bf16.mxu0 0
        %1644 = vmatpush1.bf16.msra.mxu0 0
        %1645 = vmatprep.subr.bf16.mxu0 0
        %1646 = vmatpush1.bf16.msra.mxu0 0
        %1647 = vmatprep.subr.bf16.mxu0 0
        %1648 = vmatpush1.bf16.msra.mxu0 0
        %1649 = vmatprep.mubr.bf16.mxu0 0
        %1650 = vmatmul.mubr.bf16.gmra.mrb[0].mxu0 %v1603
        %v1651 = vpop.f32.mrb[0].mxu0
        %v1652 = vadd.f32 0.0, %v1651
        %v1653 = vpop.f32.mrb[0].mxu0
        %v1654 = vpop.f32.mrb[0].mxu0
        %v1655 = vadd.f32 0.0, %v1654
        %v1656 = vpop.f32.mrb[0].mxu0
        %1657 = vmatprep.mubr.bf16.mxu0 0
        %1658 = vmatmul.mubr.bf16.gmra.mrb[0].mxu0 %v1606
        %v1659 = vpop.f32.mrb[0].mxu0
        %v1660 = vadd.f32 0.0, %v1659
        %v1661 = vpop.f32.mrb[0].mxu0
        %v1662 = vpop.f32.mrb[0].mxu0
        %v1663 = vadd.f32 0.0, %v1662
        %v1664 = vpop.f32.mrb[0].mxu0
        %1665 = vmatprep.mubr.bf16.mxu0 0
        %1666 = vmatmul.mubr.bf16.gmra.mrb[0].mxu0 %v1609
        %v1667 = vpop.f32.mrb[0].mxu0
        %v1668 = vadd.f32 0.0, %v1667
        %v1669 = vpop.f32.mrb[0].mxu0
        %v1670 = vpop.f32.mrb[0].mxu0
        %v1671 = vadd.f32 0.0, %v1670
        %v1672 = vpop.f32.mrb[0].mxu0
        %1673 = vmatprep.mubr.bf16.mxu0 0
        %1674 = vmatmul.mubr.bf16.gmra.mrb[0].mxu0 %v1612
        %v1675 = vpop.f32.mrb[0].mxu0
        %v1676 = vadd.f32 0.0, %v1675
        %v1677 = vpop.f32.mrb[0].mxu0
        %v1678 = vpop.f32.mrb[0].mxu0
        %v1679 = vadd.f32 0.0, %v1678
        %v1680 = vpop.f32.mrb[0].mxu0
        %1681 = vdwg.mxu0
        %v1682 = vmul.f32 %v1652, 0.35355338
        %v1683 = vmul.f32 %v1655, 0.35355338
        %v1684 = vmul.f32 %v1660, 0.35355338
        %v1685 = vmul.f32 %v1663, 0.35355338
        %v1686 = vmul.f32 %v1668, 0.35355338
        %v1687 = vmul.f32 %v1671, 0.35355338
        %v1688 = vmul.f32 %v1676, 0.35355338
        %v1689 = vmul.f32 %v1679, 0.35355338
        %v1690 = vsel %vm768, %v1682, -inf
        %1691 = vmax.xlane.f32.xlu0 %v1690
        %v1692 = vpop.xlane.xlu0 %1691
        %v1693 = vsel %vm768, %v1683, -inf
        %1694 = vmax.xlane.f32.xlu0 %v1693
        %v1695 = vpop.xlane.xlu0 %1694
        %v1696 = vsel %vm768, %v1684, -inf
        %1697 = vmax.xlane.f32.xlu0 %v1696
        %v1698 = vpop.xlane.xlu0 %1697
        %v1699 = vsel %vm768, %v1685, -inf
        %1700 = vmax.xlane.f32.xlu0 %v1699
        %v1701 = vpop.xlane.xlu0 %1700
        %v1702 = vsel %vm768, %v1686, -inf
        %1703 = vmax.xlane.f32.xlu0 %v1702
        %v1704 = vpop.xlane.xlu0 %1703
        %v1705 = vsel %vm768, %v1687, -inf
        %1706 = vmax.xlane.f32.xlu0 %v1705
        %v1707 = vpop.xlane.xlu0 %1706
        %v1708 = vsel %vm768, %v1688, -inf
        %1709 = vmax.xlane.f32.xlu0 %v1708
        %v1710 = vpop.xlane.xlu0 %1709
        %v1711 = vsel %vm768, %v1689, -inf
        %1712 = vmax.xlane.f32.xlu0 %v1711
        %v1713 = vpop.xlane.xlu0 %1712
        %v1714 = vsub.f32 %v1682, %v1692
        %v1715 = vsub.f32 %v1683, %v1695
        %v1716 = vsub.f32 %v1684, %v1698
        %v1717 = vsub.f32 %v1685, %v1701
        %v1718 = vsub.f32 %v1686, %v1704
        %v1719 = vsub.f32 %v1687, %v1707
        %v1720 = vsub.f32 %v1688, %v1710
        %v1721 = vsub.f32 %v1689, %v1713
        %v1722 = vmul.f32 %v1714, 1.442695
        %v1723 = vpow.pop %v1722
        %v1724 = vmul.f32 %v1715, 1.442695
        %v1725 = vpow.pop %v1724
        %v1726 = vmul.f32 %v1716, 1.442695
        %v1727 = vpow.pop %v1726
        %v1728 = vmul.f32 %v1717, 1.442695
        %v1729 = vpow.pop %v1728
        %v1730 = vmul.f32 %v1718, 1.442695
        %v1731 = vpow.pop %v1730
        %v1732 = vmul.f32 %v1719, 1.442695
        %v1733 = vpow.pop %v1732
        %v1734 = vmul.f32 %v1720, 1.442695
        %v1735 = vpow.pop %v1734
        %v1736 = vmul.f32 %v1721, 1.442695
        %v1737 = vpow.pop %v1736
        %v1738 = vsel %vm768, %v1723, 0.0
        %1739 = vadd.xlane.f32.xlu0 %v1738
        %v1740 = vpop.xlane.xlu0 %1739
        %v1741 = vsel %vm768, %v1725, 0.0
        %1742 = vadd.xlane.f32.xlu0 %v1741
        %v1743 = vpop.xlane.xlu0 %1742
        %v1744 = vsel %vm768, %v1727, 0.0
        %1745 = vadd.xlane.f32.xlu0 %v1744
        %v1746 = vpop.xlane.xlu0 %1745
        %v1747 = vsel %vm768, %v1729, 0.0
        %1748 = vadd.xlane.f32.xlu0 %v1747
        %v1749 = vpop.xlane.xlu0 %1748
        %v1750 = vsel %vm768, %v1731, 0.0
        %1751 = vadd.xlane.f32.xlu0 %v1750
        %v1752 = vpop.xlane.xlu0 %1751
        %v1753 = vsel %vm768, %v1733, 0.0
        %1754 = vadd.xlane.f32.xlu0 %v1753
        %v1755 = vpop.xlane.xlu0 %1754
        %v1756 = vsel %vm768, %v1735, 0.0
        %1757 = vadd.xlane.f32.xlu0 %v1756
        %v1758 = vpop.xlane.xlu0 %1757
        %v1759 = vsel %vm768, %v1737, 0.0
        %1760 = vadd.xlane.f32.xlu0 %v1759
        %v1761 = vpop.xlane.xlu0 %1760
        %v1762 = vrcp.pop %v1740
        %v1763 = vrcp.pop %v1743
        %v1764 = vrcp.pop %v1746
        %v1765 = vrcp.pop %v1749
        %v1766 = vrcp.pop %v1752
        %v1767 = vrcp.pop %v1755
        %v1768 = vrcp.pop %v1758
        %v1769 = vrcp.pop %v1761
        %v1770 = vmul.f32 %v1723, %v1762
        %v1771 = vmul.f32 %v1725, %v1763
        %v1772 = vmul.f32 %v1727, %v1764
        %v1773 = vmul.f32 %v1729, %v1765
        %v1774 = vmul.f32 %v1731, %v1766
        %v1775 = vmul.f32 %v1733, %v1767
        %v1776 = vmul.f32 %v1735, %v1768
        %v1777 = vmul.f32 %v1737, %v1769
        %v1778 = vpack.c.bf16 %v1771, %v1770
        %v1779 = vpack.c.bf16 %v1773, %v1772
        %v1780 = vpack.c.bf16 %v1775, %v1774
        %v1781 = vpack.c.bf16 %v1777, %v1776
        %1782 = vrot.lane.b32.xlu0 %v629, 104
        %v1783 = vpop.permute.xlu0 %1782
        %1784 = vrot.lane.b32.xlu0 %v631, 104
        %v1785 = vpop.permute.xlu0 %1784
        %1786 = vrot.lane.b32.xlu0 %v633, 104
        %v1787 = vpop.permute.xlu0 %1786
        %1788 = vrot.lane.b32.xlu0 %v635, 104
        %v1789 = vpop.permute.xlu0 %1788
        %v1795 = vsel %vm768, %v1778, 0
        %v1798 = vsel %vm768, %v1779, 0
        %v1801 = vsel %vm768, %v1780, 0
        %v1804 = vsel %vm768, %v1781, 0
        %1806 = vmatprep.subr.bf16.mxu0 0
        %1807 = vmatpush1.bf16.msra.mxu0 %v1783
        %1808 = vmatprep.subr.bf16.mxu0 0
        %1809 = vmatpush1.bf16.msra.mxu0 %v1785
        %1810 = vmatprep.subr.bf16.mxu0 0
        %1811 = vmatpush1.bf16.msra.mxu0 %v1787
        %1812 = vmatprep.subr.bf16.mxu0 0
        %1813 = vmatpush1.bf16.msra.mxu0 %v1789
        %1814 = vmatprep.subr.bf16.mxu0 0
        %1815 = vmatpush1.bf16.msra.mxu0 0
        %1816 = vmatprep.subr.bf16.mxu0 0
        %1817 = vmatpush1.bf16.msra.mxu0 0
        %1818 = vmatprep.subr.bf16.mxu0 0
        %1819 = vmatpush1.bf16.msra.mxu0 0
        %1820 = vmatprep.subr.bf16.mxu0 0
        %1821 = vmatpush1.bf16.msra.mxu0 0
        %1822 = vmatprep.subr.bf16.mxu0 0
        %1823 = vmatpush1.bf16.msra.mxu0 0
        %1824 = vmatprep.subr.bf16.mxu0 0
        %1825 = vmatpush1.bf16.msra.mxu0 0
        %1826 = vmatprep.subr.bf16.mxu0 0
        %1827 = vmatpush1.bf16.msra.mxu0 0
        %1828 = vmatprep.subr.bf16.mxu0 0
        %1829 = vmatpush1.bf16.msra.mxu0 0
        %1830 = vmatprep.subr.bf16.mxu0 0
        %1831 = vmatpush1.bf16.msra.mxu0 0
        %1832 = vmatprep.subr.bf16.mxu0 0
        %1833 = vmatpush1.bf16.msra.mxu0 0
        %1834 = vmatprep.subr.bf16.mxu0 0
        %1835 = vmatpush1.bf16.msra.mxu0 0
        %1836 = vmatprep.subr.bf16.mxu0 0
        %1837 = vmatpush1.bf16.msra.mxu0 0
        %1838 = vmatprep.mubr.bf16.mxu0 0
        %1839 = vmatmul.mubr.bf16.gmra.mrb[0].mxu0 %v1795
        %v1840 = vpop.f32.mrb[0].mxu0
        %v1841 = vadd.f32 0.0, %v1840
        %v1842 = vpop.f32.mrb[0].mxu0
        %v1843 = vpop.f32.mrb[0].mxu0
        %v1844 = vadd.f32 0.0, %v1843
        %v1845 = vpop.f32.mrb[0].mxu0
        %1846 = vmatprep.mubr.bf16.mxu0 0
        %1847 = vmatmul.mubr.bf16.gmra.mrb[0].mxu0 %v1798
        %v1848 = vpop.f32.mrb[0].mxu0
        %v1849 = vadd.f32 0.0, %v1848
        %v1850 = vpop.f32.mrb[0].mxu0
        %v1851 = vpop.f32.mrb[0].mxu0
        %v1852 = vadd.f32 0.0, %v1851
        %v1853 = vpop.f32.mrb[0].mxu0
        %1854 = vmatprep.mubr.bf16.mxu0 0
        %1855 = vmatmul.mubr.bf16.gmra.mrb[0].mxu0 %v1801
        %v1856 = vpop.f32.mrb[0].mxu0
        %v1857 = vadd.f32 0.0, %v1856
        %v1858 = vpop.f32.mrb[0].mxu0
        %v1859 = vpop.f32.mrb[0].mxu0
        %v1860 = vadd.f32 0.0, %v1859
        %v1861 = vpop.f32.mrb[0].mxu0
        %1862 = vmatprep.mubr.bf16.mxu0 0
        %1863 = vmatmul.mubr.bf16.gmra.mrb[0].mxu0 %v1804
        %v1864 = vpop.f32.mrb[0].mxu0
        %v1865 = vadd.f32 0.0, %v1864
        %v1866 = vpop.f32.mrb[0].mxu0
        %v1867 = vpop.f32.mrb[0].mxu0
        %v1868 = vadd.f32 0.0, %v1867
        %v1869 = vpop.f32.mrb[0].mxu0
        %1870 = vdwg.mxu0
        %1879 = vrot.lane.b32.xlu0 %v1841, 24
        %v1880 = vpop.permute.xlu0 %1879
        %1881 = vrot.lane.b32.xlu0 %v1844, 24
        %v1882 = vpop.permute.xlu0 %1881
        %1883 = vrot.lane.b32.xlu0 %v1849, 24
        %v1884 = vpop.permute.xlu0 %1883
        %1885 = vrot.lane.b32.xlu0 %v1852, 24
        %v1886 = vpop.permute.xlu0 %1885
        %1887 = vrot.lane.b32.xlu0 %v1857, 24
        %v1888 = vpop.permute.xlu0 %1887
        %1889 = vrot.lane.b32.xlu0 %v1860, 24
        %v1890 = vpop.permute.xlu0 %1889
        %1891 = vrot.lane.b32.xlu0 %v1865, 24
        %v1892 = vpop.permute.xlu0 %1891
        %1893 = vrot.lane.b32.xlu0 %v1868, 24
        %v1894 = vpop.permute.xlu0 %1893
        %vm1903 = vcmask 261312
        %1904 = vst.msk [vmem:[#allocation2] sm:$0xff] %vm1903, %v1880
        %1905 = vst.msk [vmem:[#allocation2 + $0x8] sm:$0xff] %vm1903, %v1882
        %1906 = vst.msk [vmem:[#allocation2 + $0x10] sm:$0xff] %vm1903, %v1884
        %1907 = vst.msk [vmem:[#allocation2 + $0x18] sm:$0xff] %vm1903, %v1886
        %1908 = vst.msk [vmem:[#allocation2 + $0x20] sm:$0xff] %vm1903, %v1888
        %1909 = vst.msk [vmem:[#allocation2 + $0x28] sm:$0xff] %vm1903, %v1890
        %1910 = vst.msk [vmem:[#allocation2 + $0x30] sm:$0xff] %vm1903, %v1892
        %1911 = vst.msk [vmem:[#allocation2 + $0x38] sm:$0xff] %vm1903, %v1894
        %v1912 = vld [vmem:[#allocation2] sm:$0xff]
        %v1913 = vld [vmem:[#allocation2 + $0x8] sm:$0xff]
        %v1914 = vld [vmem:[#allocation2 + $0x10] sm:$0xff]
        %v1915 = vld [vmem:[#allocation2 + $0x18] sm:$0xff]
        %v1916 = vld [vmem:[#allocation2 + $0x20] sm:$0xff]
        %v1917 = vld [vmem:[#allocation2 + $0x28] sm:$0xff]
        %v1918 = vld [vmem:[#allocation2 + $0x30] sm:$0xff]
        %v1919 = vld [vmem:[#allocation2 + $0x38] sm:$0xff]
        %v1920 = vpack.c.bf16 %v1913, %v1912
        %v1921 = vpack.c.bf16 %v1915, %v1914
        %v1922 = vpack.c.bf16 %v1917, %v1916
        %v1923 = vpack.c.bf16 %v1919, %v1918
        %v1924 = vld [vmem:[#allocation9] sm:$0xf]
        %v1925 = vld [vmem:[#allocation9 + $0x4] sm:$0xf]
        %v1926 = vld [vmem:[#allocation9 + $0x8] sm:$0xf]
        %v1927 = vld [vmem:[#allocation9 + $0xc] sm:$0xf]
        %v1928 = vld [vmem:[#allocation9 + $0x10] sm:$0xf]
        %v1929 = vld [vmem:[#allocation9 + $0x14] sm:$0xf]
        %v1930 = vld [vmem:[#allocation9 + $0x18] sm:$0xf]
        %v1931 = vld [vmem:[#allocation9 + $0x1c] sm:$0xf]
        %v1932 = vld [vmem:[#allocation9 + $0x20] sm:$0xf]
        %v1933 = vld [vmem:[#allocation9 + $0x24] sm:$0xf]
        %v1934 = vld [vmem:[#allocation9 + $0x28] sm:$0xf]
        %v1935 = vld [vmem:[#allocation9 + $0x2c] sm:$0xf]
        %v1936 = vld [vmem:[#allocation9 + $0x30] sm:$0xf]
        %v1937 = vld [vmem:[#allocation9 + $0x34] sm:$0xf]
        %v1938 = vld [vmem:[#allocation9 + $0x38] sm:$0xf]
        %v1939 = vld [vmem:[#allocation9 + $0x3c] sm:$0xf]
        %v1940 = vld [vmem:[%s4] sm:$0x1]
        %v1942 = vlaneseq
        %v1943 = vshrl.u32 %v1942, 7
        %v1944 = vsub.s32 0, %v1943
        %v1945 = vrot.slane %v1940, %v1944
        %v1963 = vunpack.c.l.b16 %v1924
        %v1964 = vunpack.c.l.b16 %v1925
        %v1965 = vunpack.c.l.b16 %v1926
        %v1966 = vunpack.c.l.b16 %v1927
        %v1967 = vunpack.c.l.b16 %v1928
        %v1968 = vunpack.c.l.b16 %v1929
        %v1969 = vunpack.c.l.b16 %v1930
        %v1970 = vunpack.c.l.b16 %v1931
        %v1971 = vunpack.c.l.b16 %v1932
        %v1972 = vunpack.c.l.b16 %v1933
        %v1973 = vunpack.c.l.b16 %v1934
        %v1974 = vunpack.c.l.b16 %v1935
        %v1975 = vunpack.c.l.b16 %v1936
        %v1976 = vunpack.c.l.b16 %v1937
        %v1977 = vunpack.c.l.b16 %v1938
        %v1978 = vunpack.c.l.b16 %v1939
        %v1979 = vpack.c.b16 %v1964, %v1963
        %v1980 = vpack.c.b16 %v1966, %v1965
        %v1981 = vpack.c.b16 %v1968, %v1967
        %v1982 = vpack.c.b16 %v1970, %v1969
        %v1983 = vpack.c.b16 %v1972, %v1971
        %v1984 = vpack.c.b16 %v1974, %v1973
        %v1985 = vpack.c.b16 %v1976, %v1975
        %v1986 = vpack.c.b16 %v1978, %v1977
        %1995 = vmatprep.subr.bf16.mxu0 0
        %1996 = vmatpush1.bf16.msra.mxu0 %v1979
        %1997 = vmatprep.subr.bf16.mxu0 0
        %1998 = vmatpush1.bf16.msra.mxu0 %v1980
        %1999 = vmatprep.subr.bf16.mxu0 0
        %2000 = vmatpush1.bf16.msra.mxu0 %v1981
        %2001 = vmatprep.subr.bf16.mxu0 0
        %2002 = vmatpush1.bf16.msra.mxu0 %v1982
        %2003 = vmatprep.subr.bf16.mxu0 0
        %2004 = vmatpush1.bf16.msra.mxu0 %v1983
        %2005 = vmatprep.subr.bf16.mxu0 0
        %2006 = vmatpush1.bf16.msra.mxu0 %v1984
        %2007 = vmatprep.subr.bf16.mxu0 0
        %2008 = vmatpush1.bf16.msra.mxu0 %v1985
        %2009 = vmatprep.subr.bf16.mxu0 0
        %2010 = vmatpush1.bf16.msra.mxu0 %v1986
        %2011 = vmatprep.subr.bf16.mxu0 0
        %2012 = vmatpush1.bf16.msra.mxu0 0
        %2013 = vmatprep.subr.bf16.mxu0 0
        %2014 = vmatpush1.bf16.msra.mxu0 0
        %2015 = vmatprep.subr.bf16.mxu0 0
        %2016 = vmatpush1.bf16.msra.mxu0 0
        %2017 = vmatprep.subr.bf16.mxu0 0
        %2018 = vmatpush1.bf16.msra.mxu0 0
        %2019 = vmatprep.subr.bf16.mxu0 0
        %2020 = vmatpush1.bf16.msra.mxu0 0
        %2021 = vmatprep.subr.bf16.mxu0 0
        %2022 = vmatpush1.bf16.msra.mxu0 0
        %2023 = vmatprep.subr.bf16.mxu0 0
        %2024 = vmatpush1.bf16.msra.mxu0 0
        %2025 = vmatprep.subr.bf16.mxu0 0
        %2026 = vmatpush1.bf16.msra.mxu0 0
        %2027 = vmatprep.mubr.bf16.mxu0 0
        %2028 = vmatmul.mubr.bf16.gmra.mrb[0].mxu0 %v1920
        %v2029 = vpop.f32.mrb[0].mxu0
        %v2030 = vadd.f32 %v1945, %v2029
        %v2031 = vpop.f32.mrb[0].mxu0
        %v2032 = vpop.f32.mrb[0].mxu0
        %v2033 = vadd.f32 %v1945, %v2032
        %v2034 = vpop.f32.mrb[0].mxu0
        %2035 = vmatprep.mubr.bf16.mxu0 0
        %2036 = vmatmul.mubr.bf16.gmra.mrb[0].mxu0 %v1921
        %v2037 = vpop.f32.mrb[0].mxu0
        %v2038 = vadd.f32 %v1945, %v2037
        %v2039 = vpop.f32.mrb[0].mxu0
        %v2040 = vpop.f32.mrb[0].mxu0
        %v2041 = vadd.f32 %v1945, %v2040
        %v2042 = vpop.f32.mrb[0].mxu0
        %2043 = vmatprep.mubr.bf16.mxu0 0
        %2044 = vmatmul.mubr.bf16.gmra.mrb[0].mxu0 %v1922
        %v2045 = vpop.f32.mrb[0].mxu0
        %v2046 = vadd.f32 %v1945, %v2045
        %v2047 = vpop.f32.mrb[0].mxu0
        %v2048 = vpop.f32.mrb[0].mxu0
        %v2049 = vadd.f32 %v1945, %v2048
        %v2050 = vpop.f32.mrb[0].mxu0
        %2051 = vmatprep.mubr.bf16.mxu0 0
        %2052 = vmatmul.mubr.bf16.gmra.mrb[0].mxu0 %v1923
        %v2053 = vpop.f32.mrb[0].mxu0
        %v2054 = vadd.f32 %v1945, %v2053
        %v2055 = vpop.f32.mrb[0].mxu0
        %v2056 = vpop.f32.mrb[0].mxu0
        %v2057 = vadd.f32 %v1945, %v2056
        %v2058 = vpop.f32.mrb[0].mxu0
        %2059 = vdwg.mxu0
        %s2060 = sld [smem:[#allocation3]]
        %v2061 = vstv %s2060
        %v2062 = vmul.f32 %v2061, %v2030
        %v2063 = vmul.f32 %v2061, %v2033
        %v2064 = vmul.f32 %v2061, %v2038
        %v2065 = vmul.f32 %v2061, %v2041
        %v2066 = vmul.f32 %v2061, %v2046
        %v2067 = vmul.f32 %v2061, %v2049
        %v2068 = vmul.f32 %v2061, %v2054
        %v2069 = vmul.f32 %v2061, %v2057
        %v2070 = vadd.f32 %v2062, %v301
        %v2071 = vadd.f32 %v2063, %v302
        %v2072 = vadd.f32 %v2064, %v303
        %v2073 = vadd.f32 %v2065, %v304
        %v2074 = vadd.f32 %v2066, %v305
        %v2075 = vadd.f32 %v2067, %v306
        %v2076 = vadd.f32 %v2068, %v307
        %v2077 = vadd.f32 %v2069, %v308
        %2078 = vst [vmem:[%s299] sm:$0xff] %v2070
        %2079 = vst [vmem:[%s299 + $0x8] sm:$0xff] %v2071
        %2080 = vst [vmem:[%s299 + $0x10] sm:$0xff] %v2072
        %2081 = vst [vmem:[%s299 + $0x18] sm:$0xff] %v2073
        %2082 = vst [vmem:[%s299 + $0x20] sm:$0xff] %v2074
        %2083 = vst [vmem:[%s299 + $0x28] sm:$0xff] %v2075
        %2084 = vst [vmem:[%s299 + $0x30] sm:$0xff] %v2076
        %2085 = vst [vmem:[%s299 + $0x38] sm:$0xff] %v2077
        %s2086 = sand.u32 %s164, 1
        %s2087 = scalar_lea.sflag [#allocation6], %s2086
        %s2088 = sand.u32 %s164, 1
        %s2089 = smul.addr %s2088, 64
        %s2090 = scalar_lea.vmem [#allocation10], %s2089
        // Predicated region
        $region57: #{tpu_custom_call.1} parent=43 // pred_check
          %p2091 = pneg %p174
        $region58: #{tpu_custom_call.1} parent=43 // pred_check_branch
          %2093 = sbr.rel (%p2091) target = $region60
        $region59: #{tpu_custom_call.1} parent=43 // pred_region
          %s2095 = ssub.s32 1024, 1024
          %2096 = vsyncadd %s2087, %s2095
          %s2097 = smul.addr %s25, 8
          %s2098 = smul.addr %s2097, 128
          %s2099 = scalar_lea.hbm %s6, %s2098
          %s2100 = sshll.u32 %s2090, 4
          %s2101 = int_to_ptr.vmem [resolvable:$true] %s2100
          %2106 = dma.vmem_to_hbm [thread:$0]  %s2101, 1024, %s2099, %s2087, 128, 128, 8
        $region60: #{tpu_custom_call.1} parent=43 // pred_fallthru
          _
      $region44: #{tpu_custom_call.1} parent=5 // pred_fallthru
        _
      %p2107 = scmp.le.s32.totalorder 2, %s20
      // Predicated region
      $region61: #{tpu_custom_call.1} parent=5 // pred_check
        %p2108 = pneg %p2107
      $region62: #{tpu_custom_call.1} parent=5 // pred_check_branch
        %2110 = sbr.rel (%p2108) target = $region64
      $region63: #{tpu_custom_call.1} parent=5 // pred_region
        %s2111 = ssub.s32 %s20, 2
        // Predicated region
        $region65: #{tpu_custom_call.1} parent=63 // pred_check
          %p2112 = pneg %p180
        $region66: #{tpu_custom_call.1} parent=63 // pred_check_branch
          %2114 = sbr.rel (%p2112) target = $region68
        $region67: #{tpu_custom_call.1} parent=63 // pred_region
          %s2115 = sand.u32 %s165, 1
          %s2116 = scalar_lea.sflag [#allocation6], %s2115
          %s2117 = sand.u32 %s165, 1
          %s2118 = smul.addr %s2117, 64
          %s2119 = scalar_lea.vmem [#allocation10], %s2118
          %2120 = dma.done %s2116, 1024
        $region68: #{tpu_custom_call.1} parent=63 // pred_fallthru
          _
      $region64: #{tpu_custom_call.1} parent=5 // pred_fallthru
        _
    $region6: #{tpu_custom_call.1} parent=1 // loop_footer
      %s24 = sadd.s32 1, %s20
    $region7: #{tpu_custom_call.1} parent=1 // loop_footer_branch
      %19 = sbr.rel target = $region3
    $region8: #{tpu_custom_call.1} parent=1 // loop_exit
      _
    %2121 = vsyncpa [#allocation5], 1
    %s2122 = scalar_lea.sflag [#allocation5], 1
    %2123 = vsyncpa %s2122, 1
    %2124 = vsyncpa [#allocation8], 1
    %2125 = vsyncpa [#allocation6], 1
    %s2126 = scalar_lea.sflag [#allocation6], 1
    %2127 = vsyncpa %s2126, 1

</llo_original>
